<compile_context>
chip_gen: v5e
topology: v5e:2x2
jax: 0.10.0
libtpu: 0.0.40
codegen_flags: <defaults>
</compile_context>

<pallas_src>
import jax
import jax.numpy as jnp
from jax.experimental import pallas as pl
from jax.experimental.pallas import tpu as pltpu


def _round_up(x, m):
    return ((x + m - 1) // m) * m


# ---------------------------------------------------------------------------
# Fused decoder-step kernel (embedding gather -> L LSTM cells -> projection)
# ---------------------------------------------------------------------------
def _make_fused_decoder_kernel(n_layers, batch, emb_dim, hid_dim):
    H = hid_dim
    E = emb_dim

    def kernel(ids_ref, h_in_ref, c_in_ref, emb_hbm, *rest):
        if n_layers > 1:
            (w0_ref, b0_ref, w_rest_ref, b_rest_ref,
             w_out_ref, b_out_ref,
             pred_ref, h_out_ref, c_out_ref,
             x_row_buf, x_fin_buf, gsem) = rest
        else:
            (w0_ref, b0_ref,
             w_out_ref, b_out_ref,
             pred_ref, h_out_ref, c_out_ref,
             x_row_buf, x_fin_buf, gsem) = rest
            w_rest_ref = b_rest_ref = None

        j = pl.program_id(0)

        # ----- state update: only on the first vocab tile ------------------
        @pl.when(j == 0)
        def _():
            # Embedding row gather: B tiny DMAs HBM->VMEM (table never copied
            # wholesale).  Scalar ids come from SMEM (scalar prefetch).
            copies = []
            for b in range(batch):
                cp = pltpu.make_async_copy(
                    emb_hbm.at[pl.ds(ids_ref[b], 1), :],
                    x_row_buf.at[pl.ds(b, 1), :],
                    gsem.at[b])
                cp.start()
                copies.append(cp)
            for cp in copies:
                cp.wait()

            # nn.Dropout(p) is identity in eval mode.
            x = x_row_buf[...].astype(jnp.bfloat16)            # [B, E]

            for l in range(n_layers):
                h_prev = h_in_ref[l]                            # [B, H] f32
                c_prev = c_in_ref[l]                            # [B, H] f32
                if l == 0:
                    w_x = w0_ref[0:E, :]                        # [E, 4H] bf16
                    w_h = w0_ref[E:, :]                         # [H, 4H] bf16
                    bias = b0_ref[...]                          # [1, 4H] f32
                else:
                    w_x = w_rest_ref[l - 1, 0:H, :]             # [H, 4H] bf16
                    w_h = w_rest_ref[l - 1, H:, :]              # [H, 4H] bf16
                    bias = b_rest_ref[l - 1]                    # [1, 4H] f32

                # Two packed matmuls (no lane-axis concat), f32 accumulate,
                # single bias add.  Gate columns packed as i|f|g|o.
                gates = (jnp.dot(x, w_x, preferred_element_type=jnp.float32)
                         + jnp.dot(h_prev.astype(jnp.bfloat16), w_h,
                                   preferred_element_type=jnp.float32)
                         + bias)

                i_g = jax.nn.sigmoid(gates[:, 0 * H:1 * H])
                f_g = jax.nn.sigmoid(gates[:, 1 * H:2 * H])
                g_g = jnp.tanh(gates[:, 2 * H:3 * H])
                o_g = jax.nn.sigmoid(gates[:, 3 * H:4 * H])

                c_new = f_g * c_prev + i_g * g_g
                h_new = o_g * jnp.tanh(c_new)

                h_out_ref[l] = h_new
                c_out_ref[l] = c_new
                x = h_new.astype(jnp.bfloat16)   # inter-layer dropout: identity

            x_fin_buf[...] = x                                  # [B, H] bf16

        # ----- projection: one lane-dense vocab tile per grid step ---------
        pred_ref[...] = (jnp.dot(x_fin_buf[...], w_out_ref[...],
                                 preferred_element_type=jnp.float32)
                         + b_out_ref[...])

    return kernel


# ---------------------------------------------------------------------------
# Parameter init (PyTorch-style init, packed kernel layout)
# ---------------------------------------------------------------------------
def init_decoder_params(key, output_dim, emb_dim, hid_dim, n_layers, *,
                        tile_v=128):
    assert tile_v % 128 == 0
    keys = iter(jax.random.split(key, 1 + 4 * n_layers + 2))
    k = 1.0 / float(hid_dim) ** 0.5

    params = {}
    # nn.Embedding(output_dim, emb_dim): N(0, 1).  Stays in HBM (row gather).
    params["emb"] = jax.random.normal(next(keys), (output_dim, emb_dim),
                                      jnp.float32)

    rest_w, rest_b = [], []
    for l in range(n_layers):
        in_dim = emb_dim if l == 0 else hid_dim
        # PyTorch layout: weight_ih [4H, in], weight_hh [4H, H], biases [4H],
        # gate order (i, f, g, o) along the 4H axis.
        w_ih = jax.random.uniform(next(keys), (4 * hid_dim, in_dim),
                                  jnp.float32, -k, k)
        w_hh = jax.random.uniform(next(keys), (4 * hid_dim, hid_dim),
                                  jnp.float32, -k, k)
        b_ih = jax.random.uniform(next(keys), (4 * hid_dim,), jnp.float32, -k, k)
        b_hh = jax.random.uniform(next(keys), (4 * hid_dim,), jnp.float32, -k, k)

        # Pack into a single [in+H, 4H] weight so that
        #   gates = [x | h] @ W_cat + (b_ih + b_hh)
        # with columns [g*H:(g+1)*H] holding gate g.
        w_ih_t = jnp.transpose(w_ih.reshape(4, hid_dim, in_dim), (0, 2, 1))
        w_hh_t = jnp.transpose(w_hh.reshape(4, hid_dim, hid_dim), (0, 2, 1))
        w_cat = jnp.concatenate([w_ih_t, w_hh_t], axis=1)       # [4, in+H, H]
        w_cat = jnp.transpose(w_cat, (1, 0, 2)).reshape(in_dim + hid_dim,
                                                        4 * hid_dim)
        b_cat = (b_ih + b_hh).reshape(1, 4 * hid_dim)

        if l == 0:
            params["w0_cat"] = w_cat.astype(jnp.bfloat16)       # [E+H, 4H]
            params["b0_cat"] = b_cat                            # [1, 4H]
        else:
            rest_w.append(w_cat.astype(jnp.bfloat16))
            rest_b.append(b_cat)
    if n_layers > 1:
        params["w_rest"] = jnp.stack(rest_w)                    # [L-1, 2H, 4H]
        params["b_rest"] = jnp.stack(rest_b)                    # [L-1, 1, 4H]

    # nn.Linear(hid_dim, output_dim); vocab padded to a multiple of tile_v for
    # lane-dense streamed projection tiles (padding sliced off by the caller).
    v_pad = _round_up(output_dim, tile_v)
    w_out = jax.random.uniform(next(keys), (output_dim, hid_dim),
                               jnp.float32, -k, k)
    b_out = jax.random.uniform(next(keys), (output_dim,), jnp.float32, -k, k)
    w_out_t = jnp.zeros((hid_dim, v_pad), jnp.float32).at[:, :output_dim].set(
        w_out.T)
    b_out_p = jnp.zeros((1, v_pad), jnp.float32).at[:, :output_dim].set(b_out)
    params["w_out_T"] = w_out_t.astype(jnp.bfloat16)            # [H, V_pad]
    params["b_out"] = b_out_p                                   # [1, V_pad]
    return params


# ---------------------------------------------------------------------------
# One decode step on PADDED arrays (pad once outside the decode loop).
#   ids_pad: [B_pad] int32, h_pad/c_pad: [L, B_pad, H] f32
# Returns (pred_pad [B_pad, V_pad], h_new [L,B_pad,H], c_new [L,B_pad,H]).
# ---------------------------------------------------------------------------
def decoder_step(params, ids_pad, h_pad, c_pad, *, tile_v=128):
    n_layers, B_pad, H = h_pad.shape
    V, E = params["emb"].shape
    V_pad = params["w_out_T"].shape[1]
    assert V_pad % tile_v == 0
    n_tiles = V_pad // tile_v

    kernel = _make_fused_decoder_kernel(n_layers, B_pad, E, H)

    def full(shape):  # whole-array VMEM block, resident across the grid
        return pl.BlockSpec(shape, lambda j, ids, _s=len(shape): (0,) * _s)

    in_specs = [
        full((n_layers, B_pad, H)),            # h_in
        full((n_layers, B_pad, H)),            # c_in
        pl.BlockSpec(memory_space=pl.ANY),     # embedding table stays in HBM
        full((E + H, 4 * H)),                  # w0_cat
        full((1, 4 * H)),                      # b0_cat
    ]
    args = [ids_pad, h_pad, c_pad, params["emb"],
            params["w0_cat"], params["b0_cat"]]
    if n_layers > 1:
        in_specs += [full((n_layers - 1, 2 * H, 4 * H)),
                     full((n_layers - 1, 1, 4 * H))]
        args += [params["w_rest"], params["b_rest"]]
    # Streamed, lane-dense projection tiles (auto double-buffered).
    in_specs += [pl.BlockSpec((H, tile_v), lambda j, ids: (0, j)),
                 pl.BlockSpec((1, tile_v), lambda j, ids: (0, j))]
    args += [params["w_out_T"], params["b_out"]]

    out_specs = (
        pl.BlockSpec((B_pad, tile_v), lambda j, ids: (0, j)),          # pred
        pl.BlockSpec((n_layers, B_pad, H), lambda j, ids: (0, 0, 0)),  # h_new
        pl.BlockSpec((n_layers, B_pad, H), lambda j, ids: (0, 0, 0)),  # c_new
    )

    grid_spec = pltpu.PrefetchScalarGridSpec(
        num_scalar_prefetch=1,           # token ids -> SMEM
        grid=(n_tiles,),
        in_specs=in_specs,
        out_specs=out_specs,
        scratch_shapes=[
            pltpu.VMEM((B_pad, E), jnp.float32),      # gathered embedding rows
            pltpu.VMEM((B_pad, H), jnp.bfloat16),     # final LSTM output
            pltpu.SemaphoreType.DMA((B_pad,)),        # row-gather semaphores
        ])

    pred_pad, h_new, c_new = pl.pallas_call(
        kernel,
        grid_spec=grid_spec,
        out_shape=(jax.ShapeDtypeStruct((B_pad, V_pad), jnp.float32),
                   jax.ShapeDtypeStruct((n_layers, B_pad, H), jnp.float32),
                   jax.ShapeDtypeStruct((n_layers, B_pad, H), jnp.float32)),
        # Reuse the incoming hidden/cell HBM buffers for the new states.
        input_output_aliases={1: 1, 2: 2},
        compiler_params=pltpu.CompilerParams(
            # LSTM state is computed on tile 0 and carried in scratch, so the
            # vocab-tile axis must stay sequential on one core.
            dimension_semantics=("arbitrary",),
            # Safe everywhere (v5e scoped default is only 16 MiB).
            vmem_limit_bytes=32 * 1024 * 1024),
    )(*args)
    return pred_pad, h_new, c_new


# ---------------------------------------------------------------------------
# Pure-JAX reference (same bf16 weight numerics as the kernel) for validation.
# NOTE: this validates the kernel against the bf16-weight math it implements;
# true PyTorch f32 numerics differ by ~1e-2 relative (bf16 weights).
# ---------------------------------------------------------------------------
def decoder_forward_ref(params, input_ids, hidden, cell):
    n_layers, B, H = hidden.shape
    V, E = params["emb"].shape
    x = params["emb"][input_ids].astype(jnp.bfloat16)
    new_h, new_c = [], []
    for l in range(n_layers):
        if l == 0:
            w, b, in_dim = params["w0_cat"], params["b0_cat"], E
        else:
            w, b, in_dim = params["w_rest"][l - 1], params["b_rest"][l - 1], H
        gates = (jnp.dot(x, w[:in_dim], preferred_element_type=jnp.float32)
                 + jnp.dot(hidden[l].astype(jnp.bfloat16), w[in_dim:],
                           preferred_element_type=jnp.float32)
                 + b)
        i_g = jax.nn.sigmoid(gates[:, 0 * H:1 * H])
        f_g = jax.nn.sigmoid(gates[:, 1 * H:2 * H])
        g_g = jnp.tanh(gates[:, 2 * H:3 * H])
        o_g = jax.nn.sigmoid(gates[:, 3 * H:4 * H])
        c_new = f_g * cell[l] + i_g * g_g
        h_new = o_g * jnp.tanh(c_new)
        new_h.append(h_new)
        new_c.append(c_new)
        x = h_new.astype(jnp.bfloat16)
    pred = (jnp.dot(x, params["w_out_T"], preferred_element_type=jnp.float32)
            + params["b_out"])
    return pred[:, :V], jnp.stack(new_h), jnp.stack(new_c)


if __name__ == "__main__":
    # Small shapes consistent with the module's forward (vocab large enough to
    # exercise more than one projection tile).
    OUTPUT_DIM = 300   # target vocab size
    EMB_DIM = 32
    HID_DIM = 32
    N_LAYERS = 2
    BATCH = 2
    TILE_V = 128

    key = jax.random.PRNGKey(0)
    k_par, k_in, k_h, k_c = jax.random.split(key, 4)

    params = init_decoder_params(k_par, OUTPUT_DIM, EMB_DIM, HID_DIM, N_LAYERS,
                                 tile_v=TILE_V)
    input_ids = jax.random.randint(k_in, (BATCH,), 0, OUTPUT_DIM, jnp.int32)
    hidden = jax.random.normal(k_h, (N_LAYERS, BATCH, HID_DIM), jnp.float32)
    cell = jax.random.normal(k_c, (N_LAYERS, BATCH, HID_DIM), jnp.float32)

    # Pad ONCE (padded state would be carried and donated across an
    # autoregressive decode loop; padded rows hold garbage state by design).
    B_pad = _round_up(max(BATCH, 8), 8)
    ids_pad = jnp.pad(input_ids, (0, B_pad - BATCH))
    h_pad = jnp.pad(hidden, ((0, 0), (0, B_pad - BATCH), (0, 0)))
    c_pad = jnp.pad(cell, ((0, 0), (0, B_pad - BATCH), (0, 0)))

    step = jax.jit(decoder_step)
    pred_pad, h_new_pad, c_new_pad = step(params, ids_pad, h_pad, c_pad)
    jax.block_until_ready((pred_pad, h_new_pad, c_new_pad))

    pred = pred_pad[:BATCH, :OUTPUT_DIM]
    h_new = h_new_pad[:, :BATCH, :]
    c_new = c_new_pad[:, :BATCH, :]

    pred_r, h_r, c_r = decoder_forward_ref(params, input_ids, hidden, cell)
    assert pred.shape == (BATCH, OUTPUT_DIM)
    assert h_new.shape == (N_LAYERS, BATCH, HID_DIM)
    assert c_new.shape == (N_LAYERS, BATCH, HID_DIM)
    assert jnp.allclose(pred, pred_r, atol=1e-3, rtol=1e-3)
    assert jnp.allclose(h_new, h_r, atol=1e-3, rtol=1e-3)
    assert jnp.allclose(c_new, c_r, atol=1e-3, rtol=1e-3)

    print("KERNEL_OK")
</pallas_src>

<mosaic_0001>
module attributes {stable_mosaic.version = 11 : i64} {
  func.func @kernel(%arg0: i32, %arg1: memref<8xi32, #tpu.memory_space<smem>>, %arg2: memref<2x8x32xf32, #tpu.memory_space<vmem>>, %arg3: memref<2x8x32xf32, #tpu.memory_space<vmem>>, %arg4: memref<300x32xf32, #tpu.memory_space<any>>, %arg5: memref<64x128xbf16, #tpu.memory_space<vmem>>, %arg6: memref<1x128xf32, #tpu.memory_space<vmem>>, %arg7: memref<1x64x128xbf16, #tpu.memory_space<vmem>>, %arg8: memref<1x1x128xf32, #tpu.memory_space<vmem>>, %arg9: memref<32x128xbf16, #tpu.memory_space<vmem>>, %arg10: memref<1x128xf32, #tpu.memory_space<vmem>>, %arg11: memref<8x128xf32, #tpu.memory_space<vmem>>, %arg12: memref<2x8x32xf32, #tpu.memory_space<vmem>>, %arg13: memref<2x8x32xf32, #tpu.memory_space<vmem>>, %arg14: memref<8x32xf32, #tpu.memory_space<vmem>>, %arg15: memref<8x32xbf16, #tpu.memory_space<vmem>>, %arg16: memref<8x!tpu.dma_semaphore, #tpu.memory_space<semaphore_mem>>) attributes {dimension_semantics = [#tpu.dimension_semantics<arbitrary>], iteration_bounds = array<i64: 3>, scalar_prefetch = 1 : i64, scratch_operands = 3 : i64, tpu.core_type = #tpu.core_type<tc>, window_params = [{pipeline_mode = #tpu.pipeline_mode<synchronous>, transform_indices = @transform_0, window_bounds = array<i64: 2, 8, 32>}, {pipeline_mode = #tpu.pipeline_mode<synchronous>, transform_indices = @transform_1, window_bounds = array<i64: 2, 8, 32>}, {}, {pipeline_mode = #tpu.pipeline_mode<synchronous>, transform_indices = @transform_3, window_bounds = array<i64: 64, 128>}, {pipeline_mode = #tpu.pipeline_mode<synchronous>, transform_indices = @transform_4, window_bounds = array<i64: 1, 128>}, {pipeline_mode = #tpu.pipeline_mode<synchronous>, transform_indices = @transform_5, window_bounds = array<i64: 1, 64, 128>}, {pipeline_mode = #tpu.pipeline_mode<synchronous>, transform_indices = @transform_6, window_bounds = array<i64: 1, 1, 128>}, {transform_indices = @transform_7, window_bounds = array<i64: 32, 128>}, {transform_indices = @transform_8, window_bounds = array<i64: 1, 128>}, {transform_indices = @transform_9, window_bounds = array<i64: 8, 128>}, {pipeline_mode = #tpu.pipeline_mode<synchronous>, transform_indices = @transform_10, window_bounds = array<i64: 2, 8, 32>}, {pipeline_mode = #tpu.pipeline_mode<synchronous>, transform_indices = @transform_11, window_bounds = array<i64: 2, 8, 32>}]} {
    %c0_i32 = arith.constant 0 : i32
    %0 = arith.cmpi eq, %arg0, %c0_i32 : i32
    %1 = arith.extui %0 : i1 to i32
    %c0_i32_0 = arith.constant 0 : i32
    %2 = arith.cmpi ne, %1, %c0_i32_0 : i32
    scf.if %2 {
      %c0_8 = arith.constant 0 : index
      %10 = memref.load %arg1[%c0_8] : memref<8xi32, #tpu.memory_space<smem>>
      %c0_i32_9 = arith.constant 0 : i32
      %c0_i32_10 = arith.constant 0 : i32
      %11 = tpu.memref_slice %arg4[%10, %c0_i32_10] : memref<300x32xf32, #tpu.memory_space<any>> -> memref<1x32xf32, #tpu.memory_space<any>>
      %c0_i32_11 = arith.constant 0 : i32
      %c0_i32_12 = arith.constant 0 : i32
      %12 = tpu.memref_slice %arg14[%c0_i32_11, %c0_i32_12] : memref<8x32xf32, #tpu.memory_space<vmem>> -> memref<1x32xf32, #tpu.memory_space<vmem>>
      %13 = tpu.memref_slice %arg16[%c0_i32_9] : memref<8x!tpu.dma_semaphore, #tpu.memory_space<semaphore_mem>> -> memref<1x!tpu.dma_semaphore, #tpu.memory_space<semaphore_mem>>
      %14 = tpu.memref_squeeze %13 : memref<1x!tpu.dma_semaphore, #tpu.memory_space<semaphore_mem>> -> memref<!tpu.dma_semaphore, #tpu.memory_space<semaphore_mem>>
      tpu.enqueue_dma source(%11 : memref<1x32xf32, #tpu.memory_space<any>>) target(%12 : memref<1x32xf32, #tpu.memory_space<vmem>>) target_semaphore(%14 : memref<!tpu.dma_semaphore, #tpu.memory_space<semaphore_mem>>)
      %c1 = arith.constant 1 : index
      %15 = memref.load %arg1[%c1] : memref<8xi32, #tpu.memory_space<smem>>
      %c1_i32 = arith.constant 1 : i32
      %c0_i32_13 = arith.constant 0 : i32
      %16 = tpu.memref_slice %arg4[%15, %c0_i32_13] : memref<300x32xf32, #tpu.memory_space<any>> -> memref<1x32xf32, #tpu.memory_space<any>>
      %c1_i32_14 = arith.constant 1 : i32
      %c0_i32_15 = arith.constant 0 : i32
      %17 = tpu.memref_slice %arg14[%c1_i32_14, %c0_i32_15] : memref<8x32xf32, #tpu.memory_space<vmem>> -> memref<1x32xf32, #tpu.memory_space<vmem>>
      %18 = tpu.memref_slice %arg16[%c1_i32] : memref<8x!tpu.dma_semaphore, #tpu.memory_space<semaphore_mem>> -> memref<1x!tpu.dma_semaphore, #tpu.memory_space<semaphore_mem>>
      %19 = tpu.memref_squeeze %18 : memref<1x!tpu.dma_semaphore, #tpu.memory_space<semaphore_mem>> -> memref<!tpu.dma_semaphore, #tpu.memory_space<semaphore_mem>>
      tpu.enqueue_dma source(%16 : memref<1x32xf32, #tpu.memory_space<any>>) target(%17 : memref<1x32xf32, #tpu.memory_space<vmem>>) target_semaphore(%19 : memref<!tpu.dma_semaphore, #tpu.memory_space<semaphore_mem>>)
      %c2 = arith.constant 2 : index
      %20 = memref.load %arg1[%c2] : memref<8xi32, #tpu.memory_space<smem>>
      %c2_i32 = arith.constant 2 : i32
      %c0_i32_16 = arith.constant 0 : i32
      %21 = tpu.memref_slice %arg4[%20, %c0_i32_16] : memref<300x32xf32, #tpu.memory_space<any>> -> memref<1x32xf32, #tpu.memory_space<any>>
      %c2_i32_17 = arith.constant 2 : i32
      %c0_i32_18 = arith.constant 0 : i32
      %22 = tpu.memref_slice %arg14[%c2_i32_17, %c0_i32_18] : memref<8x32xf32, #tpu.memory_space<vmem>> -> memref<1x32xf32, #tpu.memory_space<vmem>>
      %23 = tpu.memref_slice %arg16[%c2_i32] : memref<8x!tpu.dma_semaphore, #tpu.memory_space<semaphore_mem>> -> memref<1x!tpu.dma_semaphore, #tpu.memory_space<semaphore_mem>>
      %24 = tpu.memref_squeeze %23 : memref<1x!tpu.dma_semaphore, #tpu.memory_space<semaphore_mem>> -> memref<!tpu.dma_semaphore, #tpu.memory_space<semaphore_mem>>
      tpu.enqueue_dma source(%21 : memref<1x32xf32, #tpu.memory_space<any>>) target(%22 : memref<1x32xf32, #tpu.memory_space<vmem>>) target_semaphore(%24 : memref<!tpu.dma_semaphore, #tpu.memory_space<semaphore_mem>>)
      %c3 = arith.constant 3 : index
      %25 = memref.load %arg1[%c3] : memref<8xi32, #tpu.memory_space<smem>>
      %c3_i32 = arith.constant 3 : i32
      %c0_i32_19 = arith.constant 0 : i32
      %26 = tpu.memref_slice %arg4[%25, %c0_i32_19] : memref<300x32xf32, #tpu.memory_space<any>> -> memref<1x32xf32, #tpu.memory_space<any>>
      %c3_i32_20 = arith.constant 3 : i32
      %c0_i32_21 = arith.constant 0 : i32
      %27 = tpu.memref_slice %arg14[%c3_i32_20, %c0_i32_21] : memref<8x32xf32, #tpu.memory_space<vmem>> -> memref<1x32xf32, #tpu.memory_space<vmem>>
      %28 = tpu.memref_slice %arg16[%c3_i32] : memref<8x!tpu.dma_semaphore, #tpu.memory_space<semaphore_mem>> -> memref<1x!tpu.dma_semaphore, #tpu.memory_space<semaphore_mem>>
      %29 = tpu.memref_squeeze %28 : memref<1x!tpu.dma_semaphore, #tpu.memory_space<semaphore_mem>> -> memref<!tpu.dma_semaphore, #tpu.memory_space<semaphore_mem>>
      tpu.enqueue_dma source(%26 : memref<1x32xf32, #tpu.memory_space<any>>) target(%27 : memref<1x32xf32, #tpu.memory_space<vmem>>) target_semaphore(%29 : memref<!tpu.dma_semaphore, #tpu.memory_space<semaphore_mem>>)
      %c4 = arith.constant 4 : index
      %30 = memref.load %arg1[%c4] : memref<8xi32, #tpu.memory_space<smem>>
      %c4_i32 = arith.constant 4 : i32
      %c0_i32_22 = arith.constant 0 : i32
      %31 = tpu.memref_slice %arg4[%30, %c0_i32_22] : memref<300x32xf32, #tpu.memory_space<any>> -> memref<1x32xf32, #tpu.memory_space<any>>
      %c4_i32_23 = arith.constant 4 : i32
      %c0_i32_24 = arith.constant 0 : i32
      %32 = tpu.memref_slice %arg14[%c4_i32_23, %c0_i32_24] : memref<8x32xf32, #tpu.memory_space<vmem>> -> memref<1x32xf32, #tpu.memory_space<vmem>>
      %33 = tpu.memref_slice %arg16[%c4_i32] : memref<8x!tpu.dma_semaphore, #tpu.memory_space<semaphore_mem>> -> memref<1x!tpu.dma_semaphore, #tpu.memory_space<semaphore_mem>>
      %34 = tpu.memref_squeeze %33 : memref<1x!tpu.dma_semaphore, #tpu.memory_space<semaphore_mem>> -> memref<!tpu.dma_semaphore, #tpu.memory_space<semaphore_mem>>
      tpu.enqueue_dma source(%31 : memref<1x32xf32, #tpu.memory_space<any>>) target(%32 : memref<1x32xf32, #tpu.memory_space<vmem>>) target_semaphore(%34 : memref<!tpu.dma_semaphore, #tpu.memory_space<semaphore_mem>>)
      %c5 = arith.constant 5 : index
      %35 = memref.load %arg1[%c5] : memref<8xi32, #tpu.memory_space<smem>>
      %c5_i32 = arith.constant 5 : i32
      %c0_i32_25 = arith.constant 0 : i32
      %36 = tpu.memref_slice %arg4[%35, %c0_i32_25] : memref<300x32xf32, #tpu.memory_space<any>> -> memref<1x32xf32, #tpu.memory_space<any>>
      %c5_i32_26 = arith.constant 5 : i32
      %c0_i32_27 = arith.constant 0 : i32
      %37 = tpu.memref_slice %arg14[%c5_i32_26, %c0_i32_27] : memref<8x32xf32, #tpu.memory_space<vmem>> -> memref<1x32xf32, #tpu.memory_space<vmem>>
      %38 = tpu.memref_slice %arg16[%c5_i32] : memref<8x!tpu.dma_semaphore, #tpu.memory_space<semaphore_mem>> -> memref<1x!tpu.dma_semaphore, #tpu.memory_space<semaphore_mem>>
      %39 = tpu.memref_squeeze %38 : memref<1x!tpu.dma_semaphore, #tpu.memory_space<semaphore_mem>> -> memref<!tpu.dma_semaphore, #tpu.memory_space<semaphore_mem>>
      tpu.enqueue_dma source(%36 : memref<1x32xf32, #tpu.memory_space<any>>) target(%37 : memref<1x32xf32, #tpu.memory_space<vmem>>) target_semaphore(%39 : memref<!tpu.dma_semaphore, #tpu.memory_space<semaphore_mem>>)
      %c6 = arith.constant 6 : index
      %40 = memref.load %arg1[%c6] : memref<8xi32, #tpu.memory_space<smem>>
      %c6_i32 = arith.constant 6 : i32
      %c0_i32_28 = arith.constant 0 : i32
      %41 = tpu.memref_slice %arg4[%40, %c0_i32_28] : memref<300x32xf32, #tpu.memory_space<any>> -> memref<1x32xf32, #tpu.memory_space<any>>
      %c6_i32_29 = arith.constant 6 : i32
      %c0_i32_30 = arith.constant 0 : i32
      %42 = tpu.memref_slice %arg14[%c6_i32_29, %c0_i32_30] : memref<8x32xf32, #tpu.memory_space<vmem>> -> memref<1x32xf32, #tpu.memory_space<vmem>>
      %43 = tpu.memref_slice %arg16[%c6_i32] : memref<8x!tpu.dma_semaphore, #tpu.memory_space<semaphore_mem>> -> memref<1x!tpu.dma_semaphore, #tpu.memory_space<semaphore_mem>>
      %44 = tpu.memref_squeeze %43 : memref<1x!tpu.dma_semaphore, #tpu.memory_space<semaphore_mem>> -> memref<!tpu.dma_semaphore, #tpu.memory_space<semaphore_mem>>
      tpu.enqueue_dma source(%41 : memref<1x32xf32, #tpu.memory_space<any>>) target(%42 : memref<1x32xf32, #tpu.memory_space<vmem>>) target_semaphore(%44 : memref<!tpu.dma_semaphore, #tpu.memory_space<semaphore_mem>>)
      %c7 = arith.constant 7 : index
      %45 = memref.load %arg1[%c7] : memref<8xi32, #tpu.memory_space<smem>>
      %c7_i32 = arith.constant 7 : i32
      %c0_i32_31 = arith.constant 0 : i32
      %46 = tpu.memref_slice %arg4[%45, %c0_i32_31] : memref<300x32xf32, #tpu.memory_space<any>> -> memref<1x32xf32, #tpu.memory_space<any>>
      %c7_i32_32 = arith.constant 7 : i32
      %c0_i32_33 = arith.constant 0 : i32
      %47 = tpu.memref_slice %arg14[%c7_i32_32, %c0_i32_33] : memref<8x32xf32, #tpu.memory_space<vmem>> -> memref<1x32xf32, #tpu.memory_space<vmem>>
      %48 = tpu.memref_slice %arg16[%c7_i32] : memref<8x!tpu.dma_semaphore, #tpu.memory_space<semaphore_mem>> -> memref<1x!tpu.dma_semaphore, #tpu.memory_space<semaphore_mem>>
      %49 = tpu.memref_squeeze %48 : memref<1x!tpu.dma_semaphore, #tpu.memory_space<semaphore_mem>> -> memref<!tpu.dma_semaphore, #tpu.memory_space<semaphore_mem>>
      tpu.enqueue_dma source(%46 : memref<1x32xf32, #tpu.memory_space<any>>) target(%47 : memref<1x32xf32, #tpu.memory_space<vmem>>) target_semaphore(%49 : memref<!tpu.dma_semaphore, #tpu.memory_space<semaphore_mem>>)
      %c0_i32_34 = arith.constant 0 : i32
      %c0_i32_35 = arith.constant 0 : i32
      %50 = tpu.memref_slice %arg4[%10, %c0_i32_35] : memref<300x32xf32, #tpu.memory_space<any>> -> memref<1x32xf32, #tpu.memory_space<any>>
      %c0_i32_36 = arith.constant 0 : i32
      %c0_i32_37 = arith.constant 0 : i32
      %51 = tpu.memref_slice %arg14[%c0_i32_36, %c0_i32_37] : memref<8x32xf32, #tpu.memory_space<vmem>> -> memref<1x32xf32, #tpu.memory_space<vmem>>
      %52 = tpu.memref_slice %arg16[%c0_i32_34] : memref<8x!tpu.dma_semaphore, #tpu.memory_space<semaphore_mem>> -> memref<1x!tpu.dma_semaphore, #tpu.memory_space<semaphore_mem>>
      %53 = tpu.memref_squeeze %52 : memref<1x!tpu.dma_semaphore, #tpu.memory_space<semaphore_mem>> -> memref<!tpu.dma_semaphore, #tpu.memory_space<semaphore_mem>>
      tpu.wait_dma2 semaphore(%53 : memref<!tpu.dma_semaphore, #tpu.memory_space<semaphore_mem>>) src(%50 : memref<1x32xf32, #tpu.memory_space<any>>) dst(%51 : memref<1x32xf32, #tpu.memory_space<vmem>>)
      %c1_i32_38 = arith.constant 1 : i32
      %c0_i32_39 = arith.constant 0 : i32
      %54 = tpu.memref_slice %arg4[%15, %c0_i32_39] : memref<300x32xf32, #tpu.memory_space<any>> -> memref<1x32xf32, #tpu.memory_space<any>>
      %c1_i32_40 = arith.constant 1 : i32
      %c0_i32_41 = arith.constant 0 : i32
      %55 = tpu.memref_slice %arg14[%c1_i32_40, %c0_i32_41] : memref<8x32xf32, #tpu.memory_space<vmem>> -> memref<1x32xf32, #tpu.memory_space<vmem>>
      %56 = tpu.memref_slice %arg16[%c1_i32_38] : memref<8x!tpu.dma_semaphore, #tpu.memory_space<semaphore_mem>> -> memref<1x!tpu.dma_semaphore, #tpu.memory_space<semaphore_mem>>
      %57 = tpu.memref_squeeze %56 : memref<1x!tpu.dma_semaphore, #tpu.memory_space<semaphore_mem>> -> memref<!tpu.dma_semaphore, #tpu.memory_space<semaphore_mem>>
      tpu.wait_dma2 semaphore(%57 : memref<!tpu.dma_semaphore, #tpu.memory_space<semaphore_mem>>) src(%54 : memref<1x32xf32, #tpu.memory_space<any>>) dst(%55 : memref<1x32xf32, #tpu.memory_space<vmem>>)
      %c2_i32_42 = arith.constant 2 : i32
      %c0_i32_43 = arith.constant 0 : i32
      %58 = tpu.memref_slice %arg4[%20, %c0_i32_43] : memref<300x32xf32, #tpu.memory_space<any>> -> memref<1x32xf32, #tpu.memory_space<any>>
      %c2_i32_44 = arith.constant 2 : i32
      %c0_i32_45 = arith.constant 0 : i32
      %59 = tpu.memref_slice %arg14[%c2_i32_44, %c0_i32_45] : memref<8x32xf32, #tpu.memory_space<vmem>> -> memref<1x32xf32, #tpu.memory_space<vmem>>
      %60 = tpu.memref_slice %arg16[%c2_i32_42] : memref<8x!tpu.dma_semaphore, #tpu.memory_space<semaphore_mem>> -> memref<1x!tpu.dma_semaphore, #tpu.memory_space<semaphore_mem>>
      %61 = tpu.memref_squeeze %60 : memref<1x!tpu.dma_semaphore, #tpu.memory_space<semaphore_mem>> -> memref<!tpu.dma_semaphore, #tpu.memory_space<semaphore_mem>>
      tpu.wait_dma2 semaphore(%61 : memref<!tpu.dma_semaphore, #tpu.memory_space<semaphore_mem>>) src(%58 : memref<1x32xf32, #tpu.memory_space<any>>) dst(%59 : memref<1x32xf32, #tpu.memory_space<vmem>>)
      %c3_i32_46 = arith.constant 3 : i32
      %c0_i32_47 = arith.constant 0 : i32
      %62 = tpu.memref_slice %arg4[%25, %c0_i32_47] : memref<300x32xf32, #tpu.memory_space<any>> -> memref<1x32xf32, #tpu.memory_space<any>>
      %c3_i32_48 = arith.constant 3 : i32
      %c0_i32_49 = arith.constant 0 : i32
      %63 = tpu.memref_slice %arg14[%c3_i32_48, %c0_i32_49] : memref<8x32xf32, #tpu.memory_space<vmem>> -> memref<1x32xf32, #tpu.memory_space<vmem>>
      %64 = tpu.memref_slice %arg16[%c3_i32_46] : memref<8x!tpu.dma_semaphore, #tpu.memory_space<semaphore_mem>> -> memref<1x!tpu.dma_semaphore, #tpu.memory_space<semaphore_mem>>
      %65 = tpu.memref_squeeze %64 : memref<1x!tpu.dma_semaphore, #tpu.memory_space<semaphore_mem>> -> memref<!tpu.dma_semaphore, #tpu.memory_space<semaphore_mem>>
      tpu.wait_dma2 semaphore(%65 : memref<!tpu.dma_semaphore, #tpu.memory_space<semaphore_mem>>) src(%62 : memref<1x32xf32, #tpu.memory_space<any>>) dst(%63 : memref<1x32xf32, #tpu.memory_space<vmem>>)
      %c4_i32_50 = arith.constant 4 : i32
      %c0_i32_51 = arith.constant 0 : i32
      %66 = tpu.memref_slice %arg4[%30, %c0_i32_51] : memref<300x32xf32, #tpu.memory_space<any>> -> memref<1x32xf32, #tpu.memory_space<any>>
      %c4_i32_52 = arith.constant 4 : i32
      %c0_i32_53 = arith.constant 0 : i32
      %67 = tpu.memref_slice %arg14[%c4_i32_52, %c0_i32_53] : memref<8x32xf32, #tpu.memory_space<vmem>> -> memref<1x32xf32, #tpu.memory_space<vmem>>
      %68 = tpu.memref_slice %arg16[%c4_i32_50] : memref<8x!tpu.dma_semaphore, #tpu.memory_space<semaphore_mem>> -> memref<1x!tpu.dma_semaphore, #tpu.memory_space<semaphore_mem>>
      %69 = tpu.memref_squeeze %68 : memref<1x!tpu.dma_semaphore, #tpu.memory_space<semaphore_mem>> -> memref<!tpu.dma_semaphore, #tpu.memory_space<semaphore_mem>>
      tpu.wait_dma2 semaphore(%69 : memref<!tpu.dma_semaphore, #tpu.memory_space<semaphore_mem>>) src(%66 : memref<1x32xf32, #tpu.memory_space<any>>) dst(%67 : memref<1x32xf32, #tpu.memory_space<vmem>>)
      %c5_i32_54 = arith.constant 5 : i32
      %c0_i32_55 = arith.constant 0 : i32
      %70 = tpu.memref_slice %arg4[%35, %c0_i32_55] : memref<300x32xf32, #tpu.memory_space<any>> -> memref<1x32xf32, #tpu.memory_space<any>>
      %c5_i32_56 = arith.constant 5 : i32
      %c0_i32_57 = arith.constant 0 : i32
      %71 = tpu.memref_slice %arg14[%c5_i32_56, %c0_i32_57] : memref<8x32xf32, #tpu.memory_space<vmem>> -> memref<1x32xf32, #tpu.memory_space<vmem>>
      %72 = tpu.memref_slice %arg16[%c5_i32_54] : memref<8x!tpu.dma_semaphore, #tpu.memory_space<semaphore_mem>> -> memref<1x!tpu.dma_semaphore, #tpu.memory_space<semaphore_mem>>
      %73 = tpu.memref_squeeze %72 : memref<1x!tpu.dma_semaphore, #tpu.memory_space<semaphore_mem>> -> memref<!tpu.dma_semaphore, #tpu.memory_space<semaphore_mem>>
      tpu.wait_dma2 semaphore(%73 : memref<!tpu.dma_semaphore, #tpu.memory_space<semaphore_mem>>) src(%70 : memref<1x32xf32, #tpu.memory_space<any>>) dst(%71 : memref<1x32xf32, #tpu.memory_space<vmem>>)
      %c6_i32_58 = arith.constant 6 : i32
      %c0_i32_59 = arith.constant 0 : i32
      %74 = tpu.memref_slice %arg4[%40, %c0_i32_59] : memref<300x32xf32, #tpu.memory_space<any>> -> memref<1x32xf32, #tpu.memory_space<any>>
      %c6_i32_60 = arith.constant 6 : i32
      %c0_i32_61 = arith.constant 0 : i32
      %75 = tpu.memref_slice %arg14[%c6_i32_60, %c0_i32_61] : memref<8x32xf32, #tpu.memory_space<vmem>> -> memref<1x32xf32, #tpu.memory_space<vmem>>
      %76 = tpu.memref_slice %arg16[%c6_i32_58] : memref<8x!tpu.dma_semaphore, #tpu.memory_space<semaphore_mem>> -> memref<1x!tpu.dma_semaphore, #tpu.memory_space<semaphore_mem>>
      %77 = tpu.memref_squeeze %76 : memref<1x!tpu.dma_semaphore, #tpu.memory_space<semaphore_mem>> -> memref<!tpu.dma_semaphore, #tpu.memory_space<semaphore_mem>>
      tpu.wait_dma2 semaphore(%77 : memref<!tpu.dma_semaphore, #tpu.memory_space<semaphore_mem>>) src(%74 : memref<1x32xf32, #tpu.memory_space<any>>) dst(%75 : memref<1x32xf32, #tpu.memory_space<vmem>>)
      %c7_i32_62 = arith.constant 7 : i32
      %c0_i32_63 = arith.constant 0 : i32
      %78 = tpu.memref_slice %arg4[%45, %c0_i32_63] : memref<300x32xf32, #tpu.memory_space<any>> -> memref<1x32xf32, #tpu.memory_space<any>>
      %c7_i32_64 = arith.constant 7 : i32
      %c0_i32_65 = arith.constant 0 : i32
      %79 = tpu.memref_slice %arg14[%c7_i32_64, %c0_i32_65] : memref<8x32xf32, #tpu.memory_space<vmem>> -> memref<1x32xf32, #tpu.memory_space<vmem>>
      %80 = tpu.memref_slice %arg16[%c7_i32_62] : memref<8x!tpu.dma_semaphore, #tpu.memory_space<semaphore_mem>> -> memref<1x!tpu.dma_semaphore, #tpu.memory_space<semaphore_mem>>
      %81 = tpu.memref_squeeze %80 : memref<1x!tpu.dma_semaphore, #tpu.memory_space<semaphore_mem>> -> memref<!tpu.dma_semaphore, #tpu.memory_space<semaphore_mem>>
      tpu.wait_dma2 semaphore(%81 : memref<!tpu.dma_semaphore, #tpu.memory_space<semaphore_mem>>) src(%78 : memref<1x32xf32, #tpu.memory_space<any>>) dst(%79 : memref<1x32xf32, #tpu.memory_space<vmem>>)
      %c0_66 = arith.constant 0 : index
      %c0_67 = arith.constant 0 : index
      %82 = vector.load %arg14[%c0_66, %c0_67] : memref<8x32xf32, #tpu.memory_space<vmem>>, vector<8x32xf32>
      %83 = arith.truncf %82 : vector<8x32xf32> to vector<8x32xbf16>
      %c0_68 = arith.constant 0 : index
      %c0_69 = arith.constant 0 : index
      %c0_70 = arith.constant 0 : index
      %84 = vector.load %arg2[%c0_68, %c0_69, %c0_70] : memref<2x8x32xf32, #tpu.memory_space<vmem>>, vector<1x8x32xf32>
      %85 = vector.shape_cast %84 : vector<1x8x32xf32> to vector<8x32xf32>
      %c0_71 = arith.constant 0 : index
      %c0_72 = arith.constant 0 : index
      %c0_73 = arith.constant 0 : index
      %86 = vector.load %arg3[%c0_71, %c0_72, %c0_73] : memref<2x8x32xf32, #tpu.memory_space<vmem>>, vector<1x8x32xf32>
      %87 = vector.shape_cast %86 : vector<1x8x32xf32> to vector<8x32xf32>
      %c0_74 = arith.constant 0 : index
      %c0_75 = arith.constant 0 : index
      %88 = vector.load %arg5[%c0_74, %c0_75] : memref<64x128xbf16, #tpu.memory_space<vmem>>, vector<32x128xbf16>
      %c32 = arith.constant 32 : index
      %c0_76 = arith.constant 0 : index
      %89 = vector.load %arg5[%c32, %c0_76] : memref<64x128xbf16, #tpu.memory_space<vmem>>, vector<32x128xbf16>
      %c0_77 = arith.constant 0 : index
      %c0_78 = arith.constant 0 : index
      %90 = vector.load %arg6[%c0_77, %c0_78] : memref<1x128xf32, #tpu.memory_space<vmem>>, vector<1x128xf32>
      %cst_79 = arith.constant dense<0.000000e+00> : vector<8x128xf32>
      %91 = tpu.matmul %83, %88, %cst_79 {dimension_numbers = #tpu.dot_dimension_numbers<[1], [0], [0], [1], [0, 0, 1, 1], [], []>} : vector<8x32xbf16>, vector<32x128xbf16>, vector<8x128xf32> -> vector<8x128xf32>
      %92 = arith.truncf %85 : vector<8x32xf32> to vector<8x32xbf16>
      %cst_80 = arith.constant dense<0.000000e+00> : vector<8x128xf32>
      %93 = tpu.matmul %92, %89, %cst_80 {dimension_numbers = #tpu.dot_dimension_numbers<[1], [0], [0], [1], [0, 0, 1, 1], [], []>} : vector<8x32xbf16>, vector<32x128xbf16>, vector<8x128xf32> -> vector<8x128xf32>
      %94 = arith.addf %91, %93 : vector<8x128xf32>
      %95 = vector.broadcast %90 : vector<1x128xf32> to vector<8x128xf32>
      %96 = arith.addf %94, %95 : vector<8x128xf32>
      %97 = vector.extract_strided_slice %96 {offsets = [0, 0], sizes = [8, 32], strides = [1, 1]} : vector<8x128xf32> to vector<8x32xf32>
      %98 = arith.negf %97 : vector<8x32xf32>
      %99 = math.exp %98 : vector<8x32xf32>
      %cst_81 = arith.constant 1.000000e+00 : f32
      %100 = vector.broadcast %cst_81 : f32 to vector<8x32xf32>
      %101 = arith.addf %100, %99 : vector<8x32xf32>
      %102 = arith.divf %100, %101 : vector<8x32xf32>
      %103 = vector.extract_strided_slice %96 {offsets = [0, 32], sizes = [8, 32], strides = [1, 1]} : vector<8x128xf32> to vector<8x32xf32>
      %104 = arith.negf %103 : vector<8x32xf32>
      %105 = math.exp %104 : vector<8x32xf32>
      %cst_82 = arith.constant 1.000000e+00 : f32
      %106 = vector.broadcast %cst_82 : f32 to vector<8x32xf32>
      %107 = arith.addf %106, %105 : vector<8x32xf32>
      %108 = arith.divf %106, %107 : vector<8x32xf32>
      %109 = vector.extract_strided_slice %96 {offsets = [0, 64], sizes = [8, 32], strides = [1, 1]} : vector<8x128xf32> to vector<8x32xf32>
      %110 = math.tanh %109 : vector<8x32xf32>
      %111 = vector.extract_strided_slice %96 {offsets = [0, 96], sizes = [8, 32], strides = [1, 1]} : vector<8x128xf32> to vector<8x32xf32>
      %112 = arith.negf %111 : vector<8x32xf32>
      %113 = math.exp %112 : vector<8x32xf32>
      %cst_83 = arith.constant 1.000000e+00 : f32
      %114 = vector.broadcast %cst_83 : f32 to vector<8x32xf32>
      %115 = arith.addf %114, %113 : vector<8x32xf32>
      %116 = arith.divf %114, %115 : vector<8x32xf32>
      %117 = arith.mulf %108, %87 : vector<8x32xf32>
      %118 = arith.mulf %102, %110 : vector<8x32xf32>
      %119 = arith.addf %117, %118 : vector<8x32xf32>
      %120 = math.tanh %119 : vector<8x32xf32>
      %121 = arith.mulf %116, %120 : vector<8x32xf32>
      %c0_84 = arith.constant 0 : index
      %c0_85 = arith.constant 0 : index
      %c0_86 = arith.constant 0 : index
      %122 = vector.load %arg12[%c0_84, %c0_85, %c0_86] : memref<2x8x32xf32, #tpu.memory_space<vmem>>, vector<1x8x32xf32>
      %123 = vector.shape_cast %122 : vector<1x8x32xf32> to vector<8x32xf32>
      %124 = vector.shape_cast %121 : vector<8x32xf32> to vector<1x8x32xf32>
      tpu.vector_store %arg12[%c0_84, %c0_85, %c0_86], %124 {strides = array<i32>} : memref<2x8x32xf32, #tpu.memory_space<vmem>>, vector<1x8x32xf32>,
      %c0_87 = arith.constant 0 : index
      %c0_88 = arith.constant 0 : index
      %c0_89 = arith.constant 0 : index
      %125 = vector.load %arg13[%c0_87, %c0_88, %c0_89] : memref<2x8x32xf32, #tpu.memory_space<vmem>>, vector<1x8x32xf32>
      %126 = vector.shape_cast %125 : vector<1x8x32xf32> to vector<8x32xf32>
      %127 = vector.shape_cast %119 : vector<8x32xf32> to vector<1x8x32xf32>
      tpu.vector_store %arg13[%c0_87, %c0_88, %c0_89], %127 {strides = array<i32>} : memref<2x8x32xf32, #tpu.memory_space<vmem>>, vector<1x8x32xf32>,
      %128 = arith.truncf %121 : vector<8x32xf32> to vector<8x32xbf16>
      %c1_90 = arith.constant 1 : index
      %c0_91 = arith.constant 0 : index
      %c0_92 = arith.constant 0 : index
      %129 = vector.load %arg2[%c1_90, %c0_91, %c0_92] : memref<2x8x32xf32, #tpu.memory_space<vmem>>, vector<1x8x32xf32>
      %130 = vector.shape_cast %129 : vector<1x8x32xf32> to vector<8x32xf32>
      %c1_93 = arith.constant 1 : index
      %c0_94 = arith.constant 0 : index
      %c0_95 = arith.constant 0 : index
      %131 = vector.load %arg3[%c1_93, %c0_94, %c0_95] : memref<2x8x32xf32, #tpu.memory_space<vmem>>, vector<1x8x32xf32>
      %132 = vector.shape_cast %131 : vector<1x8x32xf32> to vector<8x32xf32>
      %c0_96 = arith.constant 0 : index
      %c0_97 = arith.constant 0 : index
      %c0_98 = arith.constant 0 : index
      %133 = vector.load %arg7[%c0_96, %c0_97, %c0_98] : memref<1x64x128xbf16, #tpu.memory_space<vmem>>, vector<1x32x128xbf16>
      %134 = vector.shape_cast %133 : vector<1x32x128xbf16> to vector<32x128xbf16>
      %c0_99 = arith.constant 0 : index
      %c32_100 = arith.constant 32 : index
      %c0_101 = arith.constant 0 : index
      %135 = vector.load %arg7[%c0_99, %c32_100, %c0_101] : memref<1x64x128xbf16, #tpu.memory_space<vmem>>, vector<1x32x128xbf16>
      %136 = vector.shape_cast %135 : vector<1x32x128xbf16> to vector<32x128xbf16>
      %c0_102 = arith.constant 0 : index
      %c0_103 = arith.constant 0 : index
      %c0_104 = arith.constant 0 : index
      %137 = vector.load %arg8[%c0_102, %c0_103, %c0_104] : memref<1x1x128xf32, #tpu.memory_space<vmem>>, vector<1x1x128xf32>
      %138 = vector.shape_cast %137 : vector<1x1x128xf32> to vector<1x128xf32>
      %cst_105 = arith.constant dense<0.000000e+00> : vector<8x128xf32>
      %139 = tpu.matmul %128, %134, %cst_105 {dimension_numbers = #tpu.dot_dimension_numbers<[1], [0], [0], [1], [0, 0, 1, 1], [], []>} : vector<8x32xbf16>, vector<32x128xbf16>, vector<8x128xf32> -> vector<8x128xf32>
      %140 = arith.truncf %130 : vector<8x32xf32> to vector<8x32xbf16>
      %cst_106 = arith.constant dense<0.000000e+00> : vector<8x128xf32>
      %141 = tpu.matmul %140, %136, %cst_106 {dimension_numbers = #tpu.dot_dimension_numbers<[1], [0], [0], [1], [0, 0, 1, 1], [], []>} : vector<8x32xbf16>, vector<32x128xbf16>, vector<8x128xf32> -> vector<8x128xf32>
      %142 = arith.addf %139, %141 : vector<8x128xf32>
      %143 = vector.broadcast %138 : vector<1x128xf32> to vector<8x128xf32>
      %144 = arith.addf %142, %143 : vector<8x128xf32>
      %145 = vector.extract_strided_slice %144 {offsets = [0, 0], sizes = [8, 32], strides = [1, 1]} : vector<8x128xf32> to vector<8x32xf32>
      %146 = arith.negf %145 : vector<8x32xf32>
      %147 = math.exp %146 : vector<8x32xf32>
      %cst_107 = arith.constant 1.000000e+00 : f32
      %148 = vector.broadcast %cst_107 : f32 to vector<8x32xf32>
      %149 = arith.addf %148, %147 : vector<8x32xf32>
      %150 = arith.divf %148, %149 : vector<8x32xf32>
      %151 = vector.extract_strided_slice %144 {offsets = [0, 32], sizes = [8, 32], strides = [1, 1]} : vector<8x128xf32> to vector<8x32xf32>
      %152 = arith.negf %151 : vector<8x32xf32>
      %153 = math.exp %152 : vector<8x32xf32>
      %cst_108 = arith.constant 1.000000e+00 : f32
      %154 = vector.broadcast %cst_108 : f32 to vector<8x32xf32>
      %155 = arith.addf %154, %153 : vector<8x32xf32>
      %156 = arith.divf %154, %155 : vector<8x32xf32>
      %157 = vector.extract_strided_slice %144 {offsets = [0, 64], sizes = [8, 32], strides = [1, 1]} : vector<8x128xf32> to vector<8x32xf32>
      %158 = math.tanh %157 : vector<8x32xf32>
      %159 = vector.extract_strided_slice %144 {offsets = [0, 96], sizes = [8, 32], strides = [1, 1]} : vector<8x128xf32> to vector<8x32xf32>
      %160 = arith.negf %159 : vector<8x32xf32>
      %161 = math.exp %160 : vector<8x32xf32>
      %cst_109 = arith.constant 1.000000e+00 : f32
      %162 = vector.broadcast %cst_109 : f32 to vector<8x32xf32>
      %163 = arith.addf %162, %161 : vector<8x32xf32>
      %164 = arith.divf %162, %163 : vector<8x32xf32>
      %165 = arith.mulf %156, %132 : vector<8x32xf32>
      %166 = arith.mulf %150, %158 : vector<8x32xf32>
      %167 = arith.addf %165, %166 : vector<8x32xf32>
      %168 = math.tanh %167 : vector<8x32xf32>
      %169 = arith.mulf %164, %168 : vector<8x32xf32>
      %c1_110 = arith.constant 1 : index
      %c0_111 = arith.constant 0 : index
      %c0_112 = arith.constant 0 : index
      %170 = vector.load %arg12[%c1_110, %c0_111, %c0_112] : memref<2x8x32xf32, #tpu.memory_space<vmem>>, vector<1x8x32xf32>
      %171 = vector.shape_cast %170 : vector<1x8x32xf32> to vector<8x32xf32>
      %172 = vector.shape_cast %169 : vector<8x32xf32> to vector<1x8x32xf32>
      tpu.vector_store %arg12[%c1_110, %c0_111, %c0_112], %172 {strides = array<i32>} : memref<2x8x32xf32, #tpu.memory_space<vmem>>, vector<1x8x32xf32>,
      %c1_113 = arith.constant 1 : index
      %c0_114 = arith.constant 0 : index
      %c0_115 = arith.constant 0 : index
      %173 = vector.load %arg13[%c1_113, %c0_114, %c0_115] : memref<2x8x32xf32, #tpu.memory_space<vmem>>, vector<1x8x32xf32>
      %174 = vector.shape_cast %173 : vector<1x8x32xf32> to vector<8x32xf32>
      %175 = vector.shape_cast %167 : vector<8x32xf32> to vector<1x8x32xf32>
      tpu.vector_store %arg13[%c1_113, %c0_114, %c0_115], %175 {strides = array<i32>} : memref<2x8x32xf32, #tpu.memory_space<vmem>>, vector<1x8x32xf32>,
      %176 = arith.truncf %169 : vector<8x32xf32> to vector<8x32xbf16>
      %c0_116 = arith.constant 0 : index
      %c0_117 = arith.constant 0 : index
      %177 = vector.load %arg15[%c0_116, %c0_117] : memref<8x32xbf16, #tpu.memory_space<vmem>>, vector<8x32xbf16>
      tpu.vector_store %arg15[%c0_116, %c0_117], %176 {strides = array<i32>} : memref<8x32xbf16, #tpu.memory_space<vmem>>, vector<8x32xbf16>,
    } else {
    }
    %c0 = arith.constant 0 : index
    %c0_1 = arith.constant 0 : index
    %3 = vector.load %arg15[%c0, %c0_1] : memref<8x32xbf16, #tpu.memory_space<vmem>>, vector<8x32xbf16>
    %c0_2 = arith.constant 0 : index
    %c0_3 = arith.constant 0 : index
    %4 = vector.load %arg9[%c0_2, %c0_3] : memref<32x128xbf16, #tpu.memory_space<vmem>>, vector<32x128xbf16>
    %cst = arith.constant dense<0.000000e+00> : vector<8x128xf32>
    %5 = tpu.matmul %3, %4, %cst {dimension_numbers = #tpu.dot_dimension_numbers<[1], [0], [0], [1], [0, 0, 1, 1], [], []>} : vector<8x32xbf16>, vector<32x128xbf16>, vector<8x128xf32> -> vector<8x128xf32>
    %c0_4 = arith.constant 0 : index
    %c0_5 = arith.constant 0 : index
    %6 = vector.load %arg10[%c0_4, %c0_5] : memref<1x128xf32, #tpu.memory_space<vmem>>, vector<1x128xf32>
    %7 = vector.broadcast %6 : vector<1x128xf32> to vector<8x128xf32>
    %8 = arith.addf %5, %7 : vector<8x128xf32>
    %c0_6 = arith.constant 0 : index
    %c0_7 = arith.constant 0 : index
    %9 = vector.load %arg11[%c0_6, %c0_7] : memref<8x128xf32, #tpu.memory_space<vmem>>, vector<8x128xf32>
    tpu.vector_store %arg11[%c0_6, %c0_7], %8 {strides = array<i32>} : memref<8x128xf32, #tpu.memory_space<vmem>>, vector<8x128xf32>,
    return
  }
  func.func @transform_0(%arg0: i32, %arg1: memref<8xi32, #tpu.memory_space<smem>>) -> (i32, i32, i32) {
    %c0_i32 = arith.constant 0 : i32
    %c0_i32_0 = arith.constant 0 : i32
    %c0_i32_1 = arith.constant 0 : i32
    %c0_i32_2 = arith.constant 0 : i32
    return %c0_i32, %c0_i32_0, %c0_i32_1 : i32, i32, i32
  }
  func.func @transform_1(%arg0: i32, %arg1: memref<8xi32, #tpu.memory_space<smem>>) -> (i32, i32, i32) {
    %c0_i32 = arith.constant 0 : i32
    %c0_i32_0 = arith.constant 0 : i32
    %c0_i32_1 = arith.constant 0 : i32
    %c0_i32_2 = arith.constant 0 : i32
    return %c0_i32, %c0_i32_0, %c0_i32_1 : i32, i32, i32
  }
  func.func @transform_3(%arg0: i32, %arg1: memref<8xi32, #tpu.memory_space<smem>>) -> (i32, i32) {
    %c0_i32 = arith.constant 0 : i32
    %c0_i32_0 = arith.constant 0 : i32
    %c0_i32_1 = arith.constant 0 : i32
    return %c0_i32, %c0_i32_0 : i32, i32
  }
  func.func @transform_4(%arg0: i32, %arg1: memref<8xi32, #tpu.memory_space<smem>>) -> (i32, i32) {
    %c0_i32 = arith.constant 0 : i32
    %c0_i32_0 = arith.constant 0 : i32
    %c0_i32_1 = arith.constant 0 : i32
    return %c0_i32, %c0_i32_0 : i32, i32
  }
  func.func @transform_5(%arg0: i32, %arg1: memref<8xi32, #tpu.memory_space<smem>>) -> (i32, i32, i32) {
    %c0_i32 = arith.constant 0 : i32
    %c0_i32_0 = arith.constant 0 : i32
    %c0_i32_1 = arith.constant 0 : i32
    %c0_i32_2 = arith.constant 0 : i32
    return %c0_i32, %c0_i32_0, %c0_i32_1 : i32, i32, i32
  }
  func.func @transform_6(%arg0: i32, %arg1: memref<8xi32, #tpu.memory_space<smem>>) -> (i32, i32, i32) {
    %c0_i32 = arith.constant 0 : i32
    %c0_i32_0 = arith.constant 0 : i32
    %c0_i32_1 = arith.constant 0 : i32
    %c0_i32_2 = arith.constant 0 : i32
    return %c0_i32, %c0_i32_0, %c0_i32_1 : i32, i32, i32
  }
  func.func @transform_7(%arg0: i32, %arg1: memref<8xi32, #tpu.memory_space<smem>>) -> (i32, i32) {
    %c0_i32 = arith.constant 0 : i32
    %c0_i32_0 = arith.constant 0 : i32
    return %c0_i32, %arg0 : i32, i32
  }
  func.func @transform_8(%arg0: i32, %arg1: memref<8xi32, #tpu.memory_space<smem>>) -> (i32, i32) {
    %c0_i32 = arith.constant 0 : i32
    %c0_i32_0 = arith.constant 0 : i32
    return %c0_i32, %arg0 : i32, i32
  }
  func.func @transform_9(%arg0: i32, %arg1: memref<8xi32, #tpu.memory_space<smem>>) -> (i32, i32) {
    %c0_i32 = arith.constant 0 : i32
    %c0_i32_0 = arith.constant 0 : i32
    return %c0_i32, %arg0 : i32, i32
  }
  func.func @transform_10(%arg0: i32, %arg1: memref<8xi32, #tpu.memory_space<smem>>) -> (i32, i32, i32) {
    %c0_i32 = arith.constant 0 : i32
    %c0_i32_0 = arith.constant 0 : i32
    %c0_i32_1 = arith.constant 0 : i32
    %c0_i32_2 = arith.constant 0 : i32
    return %c0_i32, %c0_i32_0, %c0_i32_1 : i32, i32, i32
  }
  func.func @transform_11(%arg0: i32, %arg1: memref<8xi32, #tpu.memory_space<smem>>) -> (i32, i32, i32) {
    %c0_i32 = arith.constant 0 : i32
    %c0_i32_0 = arith.constant 0 : i32
    %c0_i32_1 = arith.constant 0 : i32
    %c0_i32_2 = arith.constant 0 : i32
    return %c0_i32, %c0_i32_0, %c0_i32_1 : i32, i32, i32
  }
}

</mosaic_0001>

<llo_original>
// kernel: decoder_step.1
$region0: #{decoder_step.1}
  #allocation0 [shape = 'u32[]', space=smem, size = 0x4, offset = 0x4, fixed_abs, tag = 'smem constant byte address 0x4 - core index']
  #allocation1 [shape = 'u32[72,128]{1,0:T(1,128)}', space=vmem, size = 0x9000, scoped, tag = 'internal scratch']
  #allocation2 [shape = 'f32[8,32]{1,0:T(8,128)}', space=vmem, size = 0x1000, scoped, tag = 'scratch operand']
  #allocation3 [shape = 'bf16[8,32]{1,0:T(8,128)(2,1)}', space=vmem, size = 0x800, scoped, tag = 'scratch operand']
  #allocation4 [shape = 's32[8]{0}', space=sflag, size = 0x20, scoped, tag = 'scratch operand']
  #allocation5 [shape = 's32[1]{0}', space=sflag, size = 0x4, scoped, tag = 'scoped memory for decoder_step.1']
  #allocation6 [shape = 'u8[512]{0}', space=smem, size = 0x200, scoped, tag = 'prefetched SMEM operand 0']
  #allocation17 [shape = 's32[]', space=sflag, size = 0x4, offset = 0, fixed_abs, tag = 'sflag constant byte address 0x0 - dummy sync flag']
  #allocation18 [shape = 's32[]', space=sflag, size = 0x4, offset = 0, fixed_abs, tag = 'sflag constant byte address 0x0 - dummy sync flag']
  #allocation19 [shape = 's32[]', space=sflag, size = 0x4, offset = 0, fixed_abs, tag = 'sflag constant byte address 0x0 - dummy sync flag']
  #allocation20 [shape = 's32[]', space=sflag, size = 0x4, offset = 0, fixed_abs, tag = 'sflag constant byte address 0x0 - dummy sync flag']
  #allocation21 [shape = 's32[]', space=sflag, size = 0x4, offset = 0, fixed_abs, tag = 'sflag constant byte address 0x0 - dummy sync flag']
  #allocation22 [shape = 's32[]', space=sflag, size = 0x4, offset = 0, fixed_abs, tag = 'sflag constant byte address 0x0 - dummy sync flag']
  #allocation23 [shape = 's32[]', space=sflag, size = 0x4, offset = 0, fixed_abs, tag = 'sflag constant byte address 0x0 - dummy sync flag']
  #allocation24 [shape = 's32[]', space=sflag, size = 0x4, offset = 0, fixed_abs, tag = 'sflag constant byte address 0x0 - dummy sync flag']
  %s0 = inlined_call_operand.vmem [shape: s32[8], index: 0, kind: input, shape index: {}]
  %s1 = inlined_call_operand.hbm [shape: f32[2,8,32], index: 1, kind: input, shape index: {}, may-alias: {1,11}]
  %s2 = inlined_call_operand.hbm [shape: f32[2,8,32], index: 2, kind: input, shape index: {}, may-alias: {2,12}]
  %s3 = inlined_call_operand.vmem [shape: f32[300,32], index: 3, kind: input, shape index: {}]
  %s4 = inlined_call_operand.vmem [shape: bf16[64,128], index: 4, kind: input, shape index: {}]
  %s5 = inlined_call_operand.vmem [shape: f32[1,128], index: 5, kind: input, shape index: {}]
  %s6 = inlined_call_operand.vmem [shape: bf16[1,64,128], index: 6, kind: input, shape index: {}]
  %s7 = inlined_call_operand.vmem [shape: f32[1,1,128], index: 7, kind: input, shape index: {}]
  %s8 = inlined_call_operand.vmem [shape: bf16[32,384], index: 8, kind: input, shape index: {}]
  %s9 = inlined_call_operand.vmem [shape: f32[1,384], index: 9, kind: input, shape index: {}]
  %s10 = inlined_call_operand.hbm [shape: f32[8,384], index: 10, kind: output, shape index: {0}]
  %s11 = inlined_call_operand.hbm [shape: f32[2,8,32], index: 11, kind: output, shape index: {1}, may-alias: {1,11}]
  %s12 = inlined_call_operand.hbm [shape: f32[2,8,32], index: 12, kind: output, shape index: {2}, may-alias: {2,12}]
  %13 = xla_tuple %s10, %s11, %s12
  %s14 = sld [smem:[#allocation0]]
  $region374: #{decoder_step.1} parent=0
    _
  %s16 = ssub.s32 1, %s14
  %s17 = scalar_select 0, %s16, %s14
  %s19 = sshll.u32 %s0, 4
  %s20 = int_to_ptr.vmem [resolvable:$true] %s19
  %22 = dma.vmem_to_smem %s20, 16, [#allocation6], [#allocation5]
  %24 = dma.done [#allocation5], 16
  %25 = sfence
  $region1: #{decoder_step.1} parent=0
    #allocation7 [shape = 'u8[8192]{0}', space=vmem, size = 0x2000, scoped, tag = 'input window, operand 1, single buffered']
    #allocation8 [shape = 's32[2]{0}', space=sflag, size = 0x8, scoped, tag = 'scoped memory for decoder_step.1']
    #allocation9 [shape = 's32[2]{0}', space=sflag, size = 0x8, scoped, tag = 'scoped memory for decoder_step.1']
    #allocation10 [shape = 'u8[8192]{0}', space=vmem, size = 0x2000, scoped, tag = 'input window, operand 2, single buffered']
    #allocation11 [shape = 's32[1]{0}', space=sflag, size = 0x4, scoped, tag = 'scoped memory for decoder_step.1']
    #allocation12 [shape = 'u8[16384]{0}', space=vmem, size = 0x4000, scoped, tag = 'input window, operand 8']
    #allocation13 [shape = 'u8[8192]{0}', space=vmem, size = 0x2000, scoped, tag = 'output window, operand 0']
    #allocation14 [shape = 'u8[8192]{0}', space=vmem, size = 0x2000, scoped, tag = 'output window, operand 1, single buffered']
    #allocation15 [shape = 's32[1]{0}', space=sflag, size = 0x4, scoped, tag = 'scoped memory for decoder_step.1']
    #allocation16 [shape = 'u8[8192]{0}', space=vmem, size = 0x2000, scoped, tag = 'output window, operand 2, single buffered']
    %26 = vsyncpa [#allocation8], 0
    %27 = vsyncpa [#allocation11], 0
    %28 = vsyncpa [#allocation9], 0
    %s29 = scalar_lea.sflag [#allocation9], 1
    %30 = vsyncpa %s29, 0
    %31 = vsyncpa [#allocation15], 0
    loop: start=0, step=1, limit=5
    $region2: #{decoder_step.1} parent=1 // loop_pre_header
      _
    $region3: #{decoder_step.1} parent=1 // loop_header
      %s33 = sphi 0, %s37
      %p34 = scmp.ge.s32.totalorder %s33, 5
      %s41 = sphi 0, %s41
      %s43 = sphi 0, %s41
      %s44 = sphi 0, %s43
      %s58 = sphi 0, %s44
      %s62 = sphi 0, %s62
      %s64 = sphi 0, %s62
      %s65 = sphi 0, %s64
      %s79 = sphi 0, %s65
      %s83 = sphi 0, %s83
      %s85 = sphi 0, %s83
      %s86 = sphi 0, %s85
      %s100 = sphi 0, %s86
      %s104 = sphi 0, %s104
      %s106 = sphi 0, %s104
      %s107 = sphi 0, %s106
      %s121 = sphi 0, %s107
      %s125 = sphi 0, %s125
      %s127 = sphi 0, %s125
      %s128 = sphi 0, %s127
      %s142 = sphi 0, %s128
      %s146 = sphi 0, %s146
      %s148 = sphi 0, %s146
      %s149 = sphi 0, %s148
      %s163 = sphi 0, %s149
      %s169 = sphi 0, %s171
      %s172 = sphi 0, %s169
      %s173 = sphi 0, %s172
      %s189 = sphi 0, %s173
      %s195 = sphi 0, %s197
      %s198 = sphi 0, %s195
      %s199 = sphi 0, %s198
      %s215 = sphi 0, %s199
      %s221 = sphi 0, %s223
      %s224 = sphi 0, %s221
      %s225 = sphi 0, %s224
      %s241 = sphi 0, %s225
      %s245 = sphi 0, %s245
      %s247 = sphi 0, %s245
      %s248 = sphi 0, %s247
      %s262 = sphi 0, %s248
      %s266 = sphi 0, %s266
      %s268 = sphi 0, %s266
      %s269 = sphi 0, %s268
      %s283 = sphi 0, %s269
    $region4: #{decoder_step.1} parent=1 // loop_header_branch
      %36 = sbr.rel (%p34) target = $region8
    $region5: #{decoder_step.1} parent=1 // loop_body
      %s38 = ssub.s32 %s33, 1
      %s39 = ssub.s32 %s33, 2
      %s40 = sadd.s32 %s33, 1
      %s42 = sadd.s32 %s41, 1
      %p45 = scmp.eq.s32.totalorder %s33, 2
      %p46 = scmp.ne.s32.totalorder %s41, %s43
      %p47 = scmp.eq.s32.totalorder %s33, 0
      %p48 = por %p46, %p47
      %p49 = scmp.ne.s32.totalorder %s41, %s43
      %p50 = scmp.eq.s32.totalorder %s38, 2
      %p51 = por %p49, %p50
      %p52 = scmp.ne.s32.totalorder %s43, %s44
      %p53 = scmp.eq.s32.totalorder %s38, 0
      %p54 = por %p52, %p53
      %p55 = scmp.ne.s32.totalorder %s43, %s44
      %p56 = scmp.eq.s32.totalorder %s39, 2
      %p57 = por %p55, %p56
      %p59 = scmp.ne.s32.totalorder %s44, %s58
      %p60 = scmp.eq.s32.totalorder %s39, 0
      %p61 = por %p59, %p60
      %s63 = sadd.s32 %s62, 1
      %p66 = scmp.eq.s32.totalorder %s33, 2
      %p67 = scmp.ne.s32.totalorder %s62, %s64
      %p68 = scmp.eq.s32.totalorder %s33, 0
      %p69 = por %p67, %p68
      %p70 = scmp.ne.s32.totalorder %s62, %s64
      %p71 = scmp.eq.s32.totalorder %s38, 2
      %p72 = por %p70, %p71
      %p73 = scmp.ne.s32.totalorder %s64, %s65
      %p74 = scmp.eq.s32.totalorder %s38, 0
      %p75 = por %p73, %p74
      %p76 = scmp.ne.s32.totalorder %s64, %s65
      %p77 = scmp.eq.s32.totalorder %s39, 2
      %p78 = por %p76, %p77
      %p80 = scmp.ne.s32.totalorder %s65, %s79
      %p81 = scmp.eq.s32.totalorder %s39, 0
      %p82 = por %p80, %p81
      %s84 = sadd.s32 %s83, 1
      %p87 = scmp.eq.s32.totalorder %s33, 2
      %p88 = scmp.ne.s32.totalorder %s83, %s85
      %p89 = scmp.eq.s32.totalorder %s33, 0
      %p90 = por %p88, %p89
      %p91 = scmp.ne.s32.totalorder %s83, %s85
      %p92 = scmp.eq.s32.totalorder %s38, 2
      %p93 = por %p91, %p92
      %p94 = scmp.ne.s32.totalorder %s85, %s86
      %p95 = scmp.eq.s32.totalorder %s38, 0
      %p96 = por %p94, %p95
      %p97 = scmp.ne.s32.totalorder %s85, %s86
      %p98 = scmp.eq.s32.totalorder %s39, 2
      %p99 = por %p97, %p98
      %p101 = scmp.ne.s32.totalorder %s86, %s100
      %p102 = scmp.eq.s32.totalorder %s39, 0
      %p103 = por %p101, %p102
      %s105 = sadd.s32 %s104, 1
      %p108 = scmp.eq.s32.totalorder %s33, 2
      %p109 = scmp.ne.s32.totalorder %s104, %s106
      %p110 = scmp.eq.s32.totalorder %s33, 0
      %p111 = por %p109, %p110
      %p112 = scmp.ne.s32.totalorder %s104, %s106
      %p113 = scmp.eq.s32.totalorder %s38, 2
      %p114 = por %p112, %p113
      %p115 = scmp.ne.s32.totalorder %s106, %s107
      %p116 = scmp.eq.s32.totalorder %s38, 0
      %p117 = por %p115, %p116
      %p118 = scmp.ne.s32.totalorder %s106, %s107
      %p119 = scmp.eq.s32.totalorder %s39, 2
      %p120 = por %p118, %p119
      %p122 = scmp.ne.s32.totalorder %s107, %s121
      %p123 = scmp.eq.s32.totalorder %s39, 0
      %p124 = por %p122, %p123
      %s126 = sadd.s32 %s125, 1
      %p129 = scmp.eq.s32.totalorder %s33, 2
      %p130 = scmp.ne.s32.totalorder %s125, %s127
      %p131 = scmp.eq.s32.totalorder %s33, 0
      %p132 = por %p130, %p131
      %p133 = scmp.ne.s32.totalorder %s125, %s127
      %p134 = scmp.eq.s32.totalorder %s38, 2
      %p135 = por %p133, %p134
      %p136 = scmp.ne.s32.totalorder %s127, %s128
      %p137 = scmp.eq.s32.totalorder %s38, 0
      %p138 = por %p136, %p137
      %p139 = scmp.ne.s32.totalorder %s127, %s128
      %p140 = scmp.eq.s32.totalorder %s39, 2
      %p141 = por %p139, %p140
      %p143 = scmp.ne.s32.totalorder %s128, %s142
      %p144 = scmp.eq.s32.totalorder %s39, 0
      %p145 = por %p143, %p144
      %s147 = sadd.s32 %s146, 1
      %p150 = scmp.eq.s32.totalorder %s33, 2
      %p151 = scmp.ne.s32.totalorder %s146, %s148
      %p152 = scmp.eq.s32.totalorder %s33, 0
      %p153 = por %p151, %p152
      %p154 = scmp.ne.s32.totalorder %s146, %s148
      %p155 = scmp.eq.s32.totalorder %s38, 2
      %p156 = por %p154, %p155
      %p157 = scmp.ne.s32.totalorder %s148, %s149
      %p158 = scmp.eq.s32.totalorder %s38, 0
      %p159 = por %p157, %p158
      %p160 = scmp.ne.s32.totalorder %s148, %s149
      %p161 = scmp.eq.s32.totalorder %s39, 2
      %p162 = por %p160, %p161
      %p164 = scmp.ne.s32.totalorder %s149, %s163
      %p165 = scmp.eq.s32.totalorder %s39, 0
      %p166 = por %p164, %p165
      %s167 = ssub.s32 %s33, %s40
      %p168 = scmp.eq.s32.totalorder %s167, 0
      %s170 = sadd.s32 %s169, 1
      %s171 = scalar_select %p168, %s169, %s170
      %p174 = pneg %p168
      %p175 = scmp.eq.s32.totalorder %s33, 2
      %p176 = por %p174, %p175
      %p177 = scmp.ne.s32.totalorder %s169, %s172
      %p178 = scmp.eq.s32.totalorder %s33, 0
      %p179 = por %p177, %p178
      %p180 = scmp.ne.s32.totalorder %s169, %s172
      %p181 = scmp.eq.s32.totalorder %s38, 2
      %p182 = por %p180, %p181
      %p183 = scmp.ne.s32.totalorder %s172, %s173
      %p184 = scmp.eq.s32.totalorder %s38, 0
      %p185 = por %p183, %p184
      %p186 = scmp.ne.s32.totalorder %s172, %s173
      %p187 = scmp.eq.s32.totalorder %s39, 2
      %p188 = por %p186, %p187
      %p190 = scmp.ne.s32.totalorder %s173, %s189
      %p191 = scmp.eq.s32.totalorder %s39, 0
      %p192 = por %p190, %p191
      %s193 = ssub.s32 %s33, %s40
      %p194 = scmp.eq.s32.totalorder %s193, 0
      %s196 = sadd.s32 %s195, 1
      %s197 = scalar_select %p194, %s195, %s196
      %p200 = pneg %p194
      %p201 = scmp.eq.s32.totalorder %s33, 2
      %p202 = por %p200, %p201
      %p203 = scmp.ne.s32.totalorder %s195, %s198
      %p204 = scmp.eq.s32.totalorder %s33, 0
      %p205 = por %p203, %p204
      %p206 = scmp.ne.s32.totalorder %s195, %s198
      %p207 = scmp.eq.s32.totalorder %s38, 2
      %p208 = por %p206, %p207
      %p209 = scmp.ne.s32.totalorder %s198, %s199
      %p210 = scmp.eq.s32.totalorder %s38, 0
      %p211 = por %p209, %p210
      %p212 = scmp.ne.s32.totalorder %s198, %s199
      %p213 = scmp.eq.s32.totalorder %s39, 2
      %p214 = por %p212, %p213
      %p216 = scmp.ne.s32.totalorder %s199, %s215
      %p217 = scmp.eq.s32.totalorder %s39, 0
      %p218 = por %p216, %p217
      %s219 = ssub.s32 %s33, %s40
      %p220 = scmp.eq.s32.totalorder %s219, 0
      %s222 = sadd.s32 %s221, 1
      %s223 = scalar_select %p220, %s221, %s222
      %p226 = pneg %p220
      %p227 = scmp.eq.s32.totalorder %s33, 2
      %p228 = por %p226, %p227
      %p229 = scmp.ne.s32.totalorder %s221, %s224
      %p230 = scmp.eq.s32.totalorder %s33, 0
      %p231 = por %p229, %p230
      %p232 = scmp.ne.s32.totalorder %s221, %s224
      %p233 = scmp.eq.s32.totalorder %s38, 2
      %p234 = por %p232, %p233
      %p235 = scmp.ne.s32.totalorder %s224, %s225
      %p236 = scmp.eq.s32.totalorder %s38, 0
      %p237 = por %p235, %p236
      %p238 = scmp.ne.s32.totalorder %s224, %s225
      %p239 = scmp.eq.s32.totalorder %s39, 2
      %p240 = por %p238, %p239
      %p242 = scmp.ne.s32.totalorder %s225, %s241
      %p243 = scmp.eq.s32.totalorder %s39, 0
      %p244 = por %p242, %p243
      %s246 = sadd.s32 %s245, 1
      %p249 = scmp.eq.s32.totalorder %s33, 2
      %p250 = scmp.ne.s32.totalorder %s245, %s247
      %p251 = scmp.eq.s32.totalorder %s33, 0
      %p252 = por %p250, %p251
      %p253 = scmp.ne.s32.totalorder %s245, %s247
      %p254 = scmp.eq.s32.totalorder %s38, 2
      %p255 = por %p253, %p254
      %p256 = scmp.ne.s32.totalorder %s247, %s248
      %p257 = scmp.eq.s32.totalorder %s38, 0
      %p258 = por %p256, %p257
      %p259 = scmp.ne.s32.totalorder %s247, %s248
      %p260 = scmp.eq.s32.totalorder %s39, 2
      %p261 = por %p259, %p260
      %p263 = scmp.ne.s32.totalorder %s248, %s262
      %p264 = scmp.eq.s32.totalorder %s39, 0
      %p265 = por %p263, %p264
      %s267 = sadd.s32 %s266, 1
      %p270 = scmp.eq.s32.totalorder %s33, 2
      %p271 = scmp.ne.s32.totalorder %s266, %s268
      %p272 = scmp.eq.s32.totalorder %s33, 0
      %p273 = por %p271, %p272
      %p274 = scmp.ne.s32.totalorder %s266, %s268
      %p275 = scmp.eq.s32.totalorder %s38, 2
      %p276 = por %p274, %p275
      %p277 = scmp.ne.s32.totalorder %s268, %s269
      %p278 = scmp.eq.s32.totalorder %s38, 0
      %p279 = por %p277, %p278
      %p280 = scmp.ne.s32.totalorder %s268, %s269
      %p281 = scmp.eq.s32.totalorder %s39, 2
      %p282 = por %p280, %p281
      %p284 = scmp.ne.s32.totalorder %s269, %s283
      %p285 = scmp.eq.s32.totalorder %s39, 0
      %p286 = por %p284, %p285
      %p287 = scmp.le.s32.totalorder 1, %s33
      %p288 = scmp.lt.s32.totalorder %s33, 4
      %p289 = pnand %p287, %p288
      %p290 = pneg %p289
      // Predicated region
      $region9: #{decoder_step.1} parent=5 // pred_check
        _
      $region10: #{decoder_step.1} parent=5 // pred_check_branch
        %292 = sbr.rel (%p289) target = $region12
      $region11: #{decoder_step.1} parent=5 // pred_region
        %s293 = ssub.s32 %s33, 1
        // Predicated region
        $region13: #{decoder_step.1} parent=11 // pred_check
          %p294 = pneg %p54
        $region14: #{decoder_step.1} parent=11 // pred_check_branch
          %296 = sbr.rel (%p294) target = $region16
        $region15: #{decoder_step.1} parent=11 // pred_region
          %298 = vsyncadd [#allocation8], 0
          %s299 = sshll.u32 %s1, 4
          %s300 = int_to_ptr.hbm [resolvable:$true] %s299
          %s301 = sshll.u32 [#allocation7], 4
          %s302 = int_to_ptr.vmem [resolvable:$true] %s301
          %307 = dma.hbm_to_vmem [thread:$0]  %s300, 256, %s302, [#allocation8], 128, 128, 8
        $region16: #{decoder_step.1} parent=11 // pred_fallthru
          _
        // Predicated region
        $region17: #{decoder_step.1} parent=11 // pred_check
          %p308 = pneg %p75
        $region18: #{decoder_step.1} parent=11 // pred_check_branch
          %310 = sbr.rel (%p308) target = $region20
        $region19: #{decoder_step.1} parent=11 // pred_region
          %312 = vsyncadd [#allocation11], 0
          %s313 = sshll.u32 %s2, 4
          %s314 = int_to_ptr.hbm [resolvable:$true] %s313
          %s315 = sshll.u32 [#allocation10], 4
          %s316 = int_to_ptr.vmem [resolvable:$true] %s315
          %321 = dma.hbm_to_vmem [thread:$0]  %s314, 256, %s316, [#allocation11], 128, 128, 8
        $region20: #{decoder_step.1} parent=11 // pred_fallthru
          _
        // Predicated region
        $region21: #{decoder_step.1} parent=11 // pred_check
          %p322 = pneg %p96
        $region22: #{decoder_step.1} parent=11 // pred_check_branch
          %324 = sbr.rel (%p322) target = $region24
        $region23: #{decoder_step.1} parent=11 // pred_region
          _
        $region24: #{decoder_step.1} parent=11 // pred_fallthru
          _
        // Predicated region
        $region25: #{decoder_step.1} parent=11 // pred_check
          %p325 = pneg %p117
        $region26: #{decoder_step.1} parent=11 // pred_check_branch
          %327 = sbr.rel (%p325) target = $region28
        $region27: #{decoder_step.1} parent=11 // pred_region
          _
        $region28: #{decoder_step.1} parent=11 // pred_fallthru
          _
        // Predicated region
        $region29: #{decoder_step.1} parent=11 // pred_check
          %p328 = pneg %p138
        $region30: #{decoder_step.1} parent=11 // pred_check_branch
          %330 = sbr.rel (%p328) target = $region32
        $region31: #{decoder_step.1} parent=11 // pred_region
          _
        $region32: #{decoder_step.1} parent=11 // pred_fallthru
          _
        // Predicated region
        $region33: #{decoder_step.1} parent=11 // pred_check
          %p331 = pneg %p159
        $region34: #{decoder_step.1} parent=11 // pred_check_branch
          %333 = sbr.rel (%p331) target = $region36
        $region35: #{decoder_step.1} parent=11 // pred_region
          _
        $region36: #{decoder_step.1} parent=11 // pred_fallthru
          _
      $region12: #{decoder_step.1} parent=5 // pred_fallthru
        _
      %p334 = scmp.lt.s32.totalorder %s33, 3
      // Predicated region
      $region37: #{decoder_step.1} parent=5 // pred_check
        %p335 = pneg %p334
      $region38: #{decoder_step.1} parent=5 // pred_check_branch
        %337 = sbr.rel (%p335) target = $region40
      $region39: #{decoder_step.1} parent=5 // pred_region
        // Predicated region
        $region41: #{decoder_step.1} parent=39 // pred_check
          %p338 = pneg %p179
        $region42: #{decoder_step.1} parent=39 // pred_check_branch
          %340 = sbr.rel (%p338) target = $region44
        $region43: #{decoder_step.1} parent=39 // pred_region
          %s341 = sand.u32 %s169, 1
          %s342 = sand.u32 %s169, 1
          %s343 = smul.addr %s342, 16
          %s344 = scalar_lea.vmem [#allocation12], %s343
          %s345 = smul.addr %s33, 4
          %s346 = scalar_lea.vmem %s8, %s345
          // Predicated region
          $region45: #{decoder_step.1} parent=43 // pred_check
            _
          $region46: #{decoder_step.1} parent=43 // pred_check_branch
            %348 = sbr.rel (0) target = $region48
          $region47: #{decoder_step.1} parent=43 // pred_region
            // Predicated region
            $region49: #{decoder_step.1} parent=47 // pred_check
              _
            $region50: #{decoder_step.1} parent=47 // pred_check_branch
              %350 = sbr.rel target = $region52
            $region51: #{decoder_step.1} parent=47 // pred_region
              // Predicated region
              $region64: #{decoder_step.1} parent=51 // pred_check
                _
              $region65: #{decoder_step.1} parent=51 // pred_check_branch
                %372 = sbr.rel (0) target = $region67
              $region66: #{decoder_step.1} parent=51 // pred_region
                loop: start=0, step=1, limit=1
                $region68: #{decoder_step.1} parent=66 // loop_pre_header
                  _
                $region69: #{decoder_step.1} parent=66 // loop_header
                  %s374 = sphi 0, %s378
                  %p375 = scmp.ge.s32.totalorder %s374, 1
                  %s379 = sphi %s346, %s346
                  %s380 = sphi %s344, %s344
                $region70: #{decoder_step.1} parent=66 // loop_header_branch
                  %377 = sbr.rel (%p375) target = $region74
                $region71: #{decoder_step.1} parent=66 // loop_body
                  _
                $region72: #{decoder_step.1} parent=66 // loop_footer
                  %s378 = sadd.s32 1, %s374
                $region73: #{decoder_step.1} parent=66 // loop_footer_branch
                  %373 = sbr.rel target = $region69
                $region74: #{decoder_step.1} parent=66 // loop_exit
                  _
                %s382 = ssub.s32 16, 1
                loop: start=0, step=1, limit=1
                $region75: #{decoder_step.1} parent=66 // loop_pre_header
                  _
                $region76: #{decoder_step.1} parent=66 // loop_header
                  %s384 = sphi 0, %s388
                  %p385 = scmp.ge.s32.totalorder %s384, 1
                  %s389 = sphi %s346, %s346
                  %s390 = sphi %s344, %s344
                $region77: #{decoder_step.1} parent=66 // loop_header_branch
                  %387 = sbr.rel (%p385) target = $region81
                $region78: #{decoder_step.1} parent=66 // loop_body
                  %v391 = vld [vmem:[%s389] sm:%s382]
                  %392 = vst [vmem:[%s390] sm:%s382] %v391
                  %v393 = vld [vmem:[%s389 + $0xc] sm:%s382]
                  %394 = vst [vmem:[%s390 + $0x4] sm:%s382] %v393
                  %v395 = vld [vmem:[%s389 + $0x18] sm:%s382]
                  %396 = vst [vmem:[%s390 + $0x8] sm:%s382] %v395
                  %v397 = vld [vmem:[%s389 + $0x24] sm:%s382]
                  %398 = vst [vmem:[%s390 + $0xc] sm:%s382] %v397
                $region79: #{decoder_step.1} parent=66 // loop_footer
                  %s388 = sadd.s32 1, %s384
                $region80: #{decoder_step.1} parent=66 // loop_footer_branch
                  %383 = sbr.rel target = $region76
                $region81: #{decoder_step.1} parent=66 // loop_exit
                  _
              $region67: #{decoder_step.1} parent=51 // pred_fallthru
                _
            $region52: #{decoder_step.1} parent=47 // pred_fallthru
              _
            // Predicated region
            $region53: #{decoder_step.1} parent=47 // pred_check
              _
            $region54: #{decoder_step.1} parent=47 // pred_check_branch
              %352 = sbr.rel (0) target = $region56
            $region55: #{decoder_step.1} parent=47 // pred_region
              %s354 = ssub.s32 16, 1
              loop: start=0, step=1, limit=1
              $region57: #{decoder_step.1} parent=55 // loop_pre_header
                _
              $region58: #{decoder_step.1} parent=55 // loop_header
                %s356 = sphi 0, %s360
                %p357 = scmp.ge.s32.totalorder %s356, 1
                %s361 = sphi %s346, %s346
                %s362 = sphi %s344, %s344
              $region59: #{decoder_step.1} parent=55 // loop_header_branch
                %359 = sbr.rel (%p357) target = $region63
              $region60: #{decoder_step.1} parent=55 // loop_body
                %v363 = vld [vmem:[%s361] sm:%s354]
                %364 = vst [vmem:[%s362] sm:%s354] %v363
                %v365 = vld [vmem:[%s361 + $0xc] sm:%s354]
                %366 = vst [vmem:[%s362 + $0x4] sm:%s354] %v365
                %v367 = vld [vmem:[%s361 + $0x18] sm:%s354]
                %368 = vst [vmem:[%s362 + $0x8] sm:%s354] %v367
                %v369 = vld [vmem:[%s361 + $0x24] sm:%s354]
                %370 = vst [vmem:[%s362 + $0xc] sm:%s354] %v369
              $region61: #{decoder_step.1} parent=55 // loop_footer
                %s360 = sadd.s32 1, %s356
              $region62: #{decoder_step.1} parent=55 // loop_footer_branch
                %355 = sbr.rel target = $region58
              $region63: #{decoder_step.1} parent=55 // loop_exit
                _
            $region56: #{decoder_step.1} parent=47 // pred_fallthru
              _
          $region48: #{decoder_step.1} parent=43 // pred_fallthru
            _
          %399 = vnop
        $region44: #{decoder_step.1} parent=39 // pred_fallthru
          _
        // Predicated region
        $region82: #{decoder_step.1} parent=39 // pred_check
          %p400 = pneg %p205
        $region83: #{decoder_step.1} parent=39 // pred_check_branch
          %402 = sbr.rel (%p400) target = $region85
        $region84: #{decoder_step.1} parent=39 // pred_region
          %p403 = scmp.lt.s32.totalorder %s33, 2
          %s404 = scalar_select %p403, %s33, 2
          %s405 = scalar_lea.vmem %s9, %s404
        $region85: #{decoder_step.1} parent=39 // pred_fallthru
          _
      $region40: #{decoder_step.1} parent=5 // pred_fallthru
        _
      %p406 = scmp.le.s32.totalorder 1, %s33
      %p407 = scmp.lt.s32.totalorder %s33, 4
      %p408 = pnand %p406, %p407
      %p409 = pneg %p408
      // Predicated region
      $region86: #{decoder_step.1} parent=5 // pred_check
        _
      $region87: #{decoder_step.1} parent=5 // pred_check_branch
        %411 = sbr.rel (%p408) target = $region89
      $region88: #{decoder_step.1} parent=5 // pred_region
        %s412 = ssub.s32 %s33, 1
        // Predicated region
        $region90: #{decoder_step.1} parent=88 // pred_check
          %p413 = pneg %p54
        $region91: #{decoder_step.1} parent=88 // pred_check_branch
          %415 = sbr.rel (%p413) target = $region93
        $region92: #{decoder_step.1} parent=88 // pred_region
          %417 = dma.done [#allocation8], 256
        $region93: #{decoder_step.1} parent=88 // pred_fallthru
          _
        // Predicated region
        $region94: #{decoder_step.1} parent=88 // pred_check
          %p418 = pneg %p75
        $region95: #{decoder_step.1} parent=88 // pred_check_branch
          %420 = sbr.rel (%p418) target = $region97
        $region96: #{decoder_step.1} parent=88 // pred_region
          %422 = dma.done [#allocation11], 256
        $region97: #{decoder_step.1} parent=88 // pred_fallthru
          _
        %s423 = sand.u32 %s172, 1
        %s424 = sand.u32 %s172, 1
        %s425 = smul.addr %s424, 16
        %s426 = scalar_lea.vmem [#allocation12], %s425
        // Predicated region
        $region98: #{decoder_step.1} parent=88 // pred_check
          %p427 = pneg %p185
        $region99: #{decoder_step.1} parent=88 // pred_check_branch
          %429 = sbr.rel (%p427) target = $region101
        $region100: #{decoder_step.1} parent=88 // pred_region
          _
        $region101: #{decoder_step.1} parent=88 // pred_fallthru
          _
        %p430 = pneg %p54
        %p431 = pneg %p51
        %p432 = pneg %p75
        %p433 = pneg %p72
        %p434 = pneg %p96
        %p435 = pneg %p93
        %p436 = pneg %p117
        %p437 = pneg %p114
        %p438 = pneg %p138
        %p439 = pneg %p135
        %p440 = pneg %p159
        %p441 = pneg %p156
        %s442 = sand.u32 %s172, 1
        %s443 = sand.u32 %s172, 1
        %s444 = smul.addr %s443, 16
        %s445 = scalar_lea.vmem [#allocation12], %s444
        %p446 = pneg %p185
        %p447 = pneg %p182
        %p448 = scmp.lt.s32.totalorder %s38, 2
        %s449 = scalar_select %p448, %s38, 2
        %s450 = scalar_lea.vmem %s9, %s449
        %p451 = pneg %p211
        %p452 = pneg %p208
        %p453 = pneg %p237
        %p454 = pneg %p234
        %s455 = sand.u32 %s224, 1
        %s456 = scalar_lea.sflag [#allocation9], %s455
        %s457 = sand.u32 %s224, 1
        %s458 = smul.addr %s457, 8
        %s459 = scalar_lea.vmem [#allocation13], %s458
        %p460 = pneg %p258
        %p461 = pneg %p255
        %p462 = pneg %p279
        %p463 = pneg %p276
        %p464 = scmp.lt.s32.totalorder %s38, 2
        %s465 = scalar_select %p464, %s38, 2
        %s466 = scalar_lea.vmem %s9, %s465
        %p468 = scmp.eq.s32.totalorder %s38, 0
        // Predicated region
        $region102: #{decoder_step.1} parent=88 // pred_check
          %p469 = pneg %p468
        $region103: #{decoder_step.1} parent=88 // pred_check_branch
          %471 = sbr.rel (%p469) target = $region105
        $region104: #{decoder_step.1} parent=88 // pred_region
          %s472 = sld [smem:[#allocation6]]
          %s473 = scalar_lea.vmem %s3, %s472
          // Predicated region
          $region106: #{decoder_step.1} parent=104 // pred_check
            _
          $region107: #{decoder_step.1} parent=104 // pred_check_branch
            %475 = sbr.rel target = $region109
          $region108: #{decoder_step.1} parent=104 // pred_region
            // Predicated region
            $region121: #{decoder_step.1} parent=108 // pred_check
              _
            $region122: #{decoder_step.1} parent=108 // pred_check_branch
              %491 = sbr.rel (0) target = $region124
            $region123: #{decoder_step.1} parent=108 // pred_region
              %s493 = ssub.s32 2, 1
              loop: start=0, step=1, limit=1
              $region125: #{decoder_step.1} parent=123 // loop_pre_header
                _
              $region126: #{decoder_step.1} parent=123 // loop_header
                %s495 = sphi 0, %s499
                %p496 = scmp.ge.s32.totalorder %s495, 1
                %s500 = sphi %s473, %s473
                %s501 = sphi [#allocation2], [#allocation2]
              $region127: #{decoder_step.1} parent=123 // loop_header_branch
                %498 = sbr.rel (%p496) target = $region131
              $region128: #{decoder_step.1} parent=123 // loop_body
                %v502 = vld [vmem:[%s500] sm:%s493]
                %503 = vst [vmem:[%s501] sm:%s493] %v502
              $region129: #{decoder_step.1} parent=123 // loop_footer
                %s499 = sadd.s32 1, %s495
              $region130: #{decoder_step.1} parent=123 // loop_footer_branch
                %494 = sbr.rel target = $region126
              $region131: #{decoder_step.1} parent=123 // loop_exit
                _
            $region124: #{decoder_step.1} parent=108 // pred_fallthru
              _
          $region109: #{decoder_step.1} parent=104 // pred_fallthru
            _
          // Predicated region
          $region110: #{decoder_step.1} parent=104 // pred_check
            _
          $region111: #{decoder_step.1} parent=104 // pred_check_branch
            %477 = sbr.rel (0) target = $region113
          $region112: #{decoder_step.1} parent=104 // pred_region
            %s479 = ssub.s32 2, 1
            loop: start=0, step=1, limit=1
            $region114: #{decoder_step.1} parent=112 // loop_pre_header
              _
            $region115: #{decoder_step.1} parent=112 // loop_header
              %s481 = sphi 0, %s485
              %p482 = scmp.ge.s32.totalorder %s481, 1
              %s486 = sphi %s473, %s473
              %s487 = sphi [#allocation2], [#allocation2]
            $region116: #{decoder_step.1} parent=112 // loop_header_branch
              %484 = sbr.rel (%p482) target = $region120
            $region117: #{decoder_step.1} parent=112 // loop_body
              %v488 = vld [vmem:[%s486] sm:%s479]
              %489 = vst [vmem:[%s487] sm:%s479] %v488
            $region118: #{decoder_step.1} parent=112 // loop_footer
              %s485 = sadd.s32 1, %s481
            $region119: #{decoder_step.1} parent=112 // loop_footer_branch
              %480 = sbr.rel target = $region115
            $region120: #{decoder_step.1} parent=112 // loop_exit
              _
          $region113: #{decoder_step.1} parent=104 // pred_fallthru
            _
          // Predicated region
          $region132: #{decoder_step.1} parent=104 // pred_check
            _
          $region133: #{decoder_step.1} parent=104 // pred_check_branch
            %506 = sbr.rel (0) target = $region135
          $region134: #{decoder_step.1} parent=104 // pred_region
            %507 = vsyncadd [#allocation4], 16
          $region135: #{decoder_step.1} parent=104 // pred_fallthru
            _
          %s508 = sld [smem:[#allocation6 + $0x1]]
          %s509 = scalar_lea.vmem %s3, %s508
          %s510 = scalar_lea.vmem [#allocation2], 1
          %s511 = scalar_lea.sflag [#allocation4], 1
          // Predicated region
          $region136: #{decoder_step.1} parent=104 // pred_check
            _
          $region137: #{decoder_step.1} parent=104 // pred_check_branch
            %513 = sbr.rel target = $region139
          $region138: #{decoder_step.1} parent=104 // pred_region
            // Predicated region
            $region151: #{decoder_step.1} parent=138 // pred_check
              _
            $region152: #{decoder_step.1} parent=138 // pred_check_branch
              %529 = sbr.rel (0) target = $region154
            $region153: #{decoder_step.1} parent=138 // pred_region
              %s531 = ssub.s32 2, 1
              loop: start=0, step=1, limit=1
              $region155: #{decoder_step.1} parent=153 // loop_pre_header
                _
              $region156: #{decoder_step.1} parent=153 // loop_header
                %s533 = sphi 0, %s537
                %p534 = scmp.ge.s32.totalorder %s533, 1
                %s538 = sphi %s509, %s509
                %s539 = sphi %s510, %s510
              $region157: #{decoder_step.1} parent=153 // loop_header_branch
                %536 = sbr.rel (%p534) target = $region161
              $region158: #{decoder_step.1} parent=153 // loop_body
                %v540 = vld [vmem:[%s538] sm:%s531]
                %541 = vst [vmem:[%s539] sm:%s531] %v540
              $region159: #{decoder_step.1} parent=153 // loop_footer
                %s537 = sadd.s32 1, %s533
              $region160: #{decoder_step.1} parent=153 // loop_footer_branch
                %532 = sbr.rel target = $region156
              $region161: #{decoder_step.1} parent=153 // loop_exit
                _
            $region154: #{decoder_step.1} parent=138 // pred_fallthru
              _
          $region139: #{decoder_step.1} parent=104 // pred_fallthru
            _
          // Predicated region
          $region140: #{decoder_step.1} parent=104 // pred_check
            _
          $region141: #{decoder_step.1} parent=104 // pred_check_branch
            %515 = sbr.rel (0) target = $region143
          $region142: #{decoder_step.1} parent=104 // pred_region
            %s517 = ssub.s32 2, 1
            loop: start=0, step=1, limit=1
            $region144: #{decoder_step.1} parent=142 // loop_pre_header
              _
            $region145: #{decoder_step.1} parent=142 // loop_header
              %s519 = sphi 0, %s523
              %p520 = scmp.ge.s32.totalorder %s519, 1
              %s524 = sphi %s509, %s509
              %s525 = sphi %s510, %s510
            $region146: #{decoder_step.1} parent=142 // loop_header_branch
              %522 = sbr.rel (%p520) target = $region150
            $region147: #{decoder_step.1} parent=142 // loop_body
              %v526 = vld [vmem:[%s524] sm:%s517]
              %527 = vst [vmem:[%s525] sm:%s517] %v526
            $region148: #{decoder_step.1} parent=142 // loop_footer
              %s523 = sadd.s32 1, %s519
            $region149: #{decoder_step.1} parent=142 // loop_footer_branch
              %518 = sbr.rel target = $region145
            $region150: #{decoder_step.1} parent=142 // loop_exit
              _
          $region143: #{decoder_step.1} parent=104 // pred_fallthru
            _
          // Predicated region
          $region162: #{decoder_step.1} parent=104 // pred_check
            _
          $region163: #{decoder_step.1} parent=104 // pred_check_branch
            %544 = sbr.rel (0) target = $region165
          $region164: #{decoder_step.1} parent=104 // pred_region
            %545 = vsyncadd %s511, 16
          $region165: #{decoder_step.1} parent=104 // pred_fallthru
            _
          %s546 = sld [smem:[#allocation6 + $0x2]]
          %s547 = scalar_lea.vmem %s3, %s546
          %s548 = scalar_lea.vmem [#allocation2], 2
          %s549 = scalar_lea.sflag [#allocation4], 2
          // Predicated region
          $region166: #{decoder_step.1} parent=104 // pred_check
            _
          $region167: #{decoder_step.1} parent=104 // pred_check_branch
            %551 = sbr.rel target = $region169
          $region168: #{decoder_step.1} parent=104 // pred_region
            // Predicated region
            $region181: #{decoder_step.1} parent=168 // pred_check
              _
            $region182: #{decoder_step.1} parent=168 // pred_check_branch
              %567 = sbr.rel (0) target = $region184
            $region183: #{decoder_step.1} parent=168 // pred_region
              %s569 = ssub.s32 2, 1
              loop: start=0, step=1, limit=1
              $region185: #{decoder_step.1} parent=183 // loop_pre_header
                _
              $region186: #{decoder_step.1} parent=183 // loop_header
                %s571 = sphi 0, %s575
                %p572 = scmp.ge.s32.totalorder %s571, 1
                %s576 = sphi %s547, %s547
                %s577 = sphi %s548, %s548
              $region187: #{decoder_step.1} parent=183 // loop_header_branch
                %574 = sbr.rel (%p572) target = $region191
              $region188: #{decoder_step.1} parent=183 // loop_body
                %v578 = vld [vmem:[%s576] sm:%s569]
                %579 = vst [vmem:[%s577] sm:%s569] %v578
              $region189: #{decoder_step.1} parent=183 // loop_footer
                %s575 = sadd.s32 1, %s571
              $region190: #{decoder_step.1} parent=183 // loop_footer_branch
                %570 = sbr.rel target = $region186
              $region191: #{decoder_step.1} parent=183 // loop_exit
                _
            $region184: #{decoder_step.1} parent=168 // pred_fallthru
              _
          $region169: #{decoder_step.1} parent=104 // pred_fallthru
            _
          // Predicated region
          $region170: #{decoder_step.1} parent=104 // pred_check
            _
          $region171: #{decoder_step.1} parent=104 // pred_check_branch
            %553 = sbr.rel (0) target = $region173
          $region172: #{decoder_step.1} parent=104 // pred_region
            %s555 = ssub.s32 2, 1
            loop: start=0, step=1, limit=1
            $region174: #{decoder_step.1} parent=172 // loop_pre_header
              _
            $region175: #{decoder_step.1} parent=172 // loop_header
              %s557 = sphi 0, %s561
              %p558 = scmp.ge.s32.totalorder %s557, 1
              %s562 = sphi %s547, %s547
              %s563 = sphi %s548, %s548
            $region176: #{decoder_step.1} parent=172 // loop_header_branch
              %560 = sbr.rel (%p558) target = $region180
            $region177: #{decoder_step.1} parent=172 // loop_body
              %v564 = vld [vmem:[%s562] sm:%s555]
              %565 = vst [vmem:[%s563] sm:%s555] %v564
            $region178: #{decoder_step.1} parent=172 // loop_footer
              %s561 = sadd.s32 1, %s557
            $region179: #{decoder_step.1} parent=172 // loop_footer_branch
              %556 = sbr.rel target = $region175
            $region180: #{decoder_step.1} parent=172 // loop_exit
              _
          $region173: #{decoder_step.1} parent=104 // pred_fallthru
            _
          // Predicated region
          $region192: #{decoder_step.1} parent=104 // pred_check
            _
          $region193: #{decoder_step.1} parent=104 // pred_check_branch
            %582 = sbr.rel (0) target = $region195
          $region194: #{decoder_step.1} parent=104 // pred_region
            %583 = vsyncadd %s549, 16
          $region195: #{decoder_step.1} parent=104 // pred_fallthru
            _
          %s584 = sld [smem:[#allocation6 + $0x3]]
          %s585 = scalar_lea.vmem %s3, %s584
          %s586 = scalar_lea.vmem [#allocation2], 3
          %s587 = scalar_lea.sflag [#allocation4], 3
          // Predicated region
          $region196: #{decoder_step.1} parent=104 // pred_check
            _
          $region197: #{decoder_step.1} parent=104 // pred_check_branch
            %589 = sbr.rel target = $region199
          $region198: #{decoder_step.1} parent=104 // pred_region
            // Predicated region
            $region211: #{decoder_step.1} parent=198 // pred_check
              _
            $region212: #{decoder_step.1} parent=198 // pred_check_branch
              %605 = sbr.rel (0) target = $region214
            $region213: #{decoder_step.1} parent=198 // pred_region
              %s607 = ssub.s32 2, 1
              loop: start=0, step=1, limit=1
              $region215: #{decoder_step.1} parent=213 // loop_pre_header
                _
              $region216: #{decoder_step.1} parent=213 // loop_header
                %s609 = sphi 0, %s613
                %p610 = scmp.ge.s32.totalorder %s609, 1
                %s614 = sphi %s585, %s585
                %s615 = sphi %s586, %s586
              $region217: #{decoder_step.1} parent=213 // loop_header_branch
                %612 = sbr.rel (%p610) target = $region221
              $region218: #{decoder_step.1} parent=213 // loop_body
                %v616 = vld [vmem:[%s614] sm:%s607]
                %617 = vst [vmem:[%s615] sm:%s607] %v616
              $region219: #{decoder_step.1} parent=213 // loop_footer
                %s613 = sadd.s32 1, %s609
              $region220: #{decoder_step.1} parent=213 // loop_footer_branch
                %608 = sbr.rel target = $region216
              $region221: #{decoder_step.1} parent=213 // loop_exit
                _
            $region214: #{decoder_step.1} parent=198 // pred_fallthru
              _
          $region199: #{decoder_step.1} parent=104 // pred_fallthru
            _
          // Predicated region
          $region200: #{decoder_step.1} parent=104 // pred_check
            _
          $region201: #{decoder_step.1} parent=104 // pred_check_branch
            %591 = sbr.rel (0) target = $region203
          $region202: #{decoder_step.1} parent=104 // pred_region
            %s593 = ssub.s32 2, 1
            loop: start=0, step=1, limit=1
            $region204: #{decoder_step.1} parent=202 // loop_pre_header
              _
            $region205: #{decoder_step.1} parent=202 // loop_header
              %s595 = sphi 0, %s599
              %p596 = scmp.ge.s32.totalorder %s595, 1
              %s600 = sphi %s585, %s585
              %s601 = sphi %s586, %s586
            $region206: #{decoder_step.1} parent=202 // loop_header_branch
              %598 = sbr.rel (%p596) target = $region210
            $region207: #{decoder_step.1} parent=202 // loop_body
              %v602 = vld [vmem:[%s600] sm:%s593]
              %603 = vst [vmem:[%s601] sm:%s593] %v602
            $region208: #{decoder_step.1} parent=202 // loop_footer
              %s599 = sadd.s32 1, %s595
            $region209: #{decoder_step.1} parent=202 // loop_footer_branch
              %594 = sbr.rel target = $region205
            $region210: #{decoder_step.1} parent=202 // loop_exit
              _
          $region203: #{decoder_step.1} parent=104 // pred_fallthru
            _
          // Predicated region
          $region222: #{decoder_step.1} parent=104 // pred_check
            _
          $region223: #{decoder_step.1} parent=104 // pred_check_branch
            %620 = sbr.rel (0) target = $region225
          $region224: #{decoder_step.1} parent=104 // pred_region
            %621 = vsyncadd %s587, 16
          $region225: #{decoder_step.1} parent=104 // pred_fallthru
            _
          %s622 = sld [smem:[#allocation6 + $0x4]]
          %s623 = scalar_lea.vmem %s3, %s622
          %s624 = scalar_lea.vmem [#allocation2], 4
          %s625 = scalar_lea.sflag [#allocation4], 4
          // Predicated region
          $region226: #{decoder_step.1} parent=104 // pred_check
            _
          $region227: #{decoder_step.1} parent=104 // pred_check_branch
            %627 = sbr.rel target = $region229
          $region228: #{decoder_step.1} parent=104 // pred_region
            // Predicated region
            $region241: #{decoder_step.1} parent=228 // pred_check
              _
            $region242: #{decoder_step.1} parent=228 // pred_check_branch
              %643 = sbr.rel (0) target = $region244
            $region243: #{decoder_step.1} parent=228 // pred_region
              %s645 = ssub.s32 2, 1
              loop: start=0, step=1, limit=1
              $region245: #{decoder_step.1} parent=243 // loop_pre_header
                _
              $region246: #{decoder_step.1} parent=243 // loop_header
                %s647 = sphi 0, %s651
                %p648 = scmp.ge.s32.totalorder %s647, 1
                %s652 = sphi %s623, %s623
                %s653 = sphi %s624, %s624
              $region247: #{decoder_step.1} parent=243 // loop_header_branch
                %650 = sbr.rel (%p648) target = $region251
              $region248: #{decoder_step.1} parent=243 // loop_body
                %v654 = vld [vmem:[%s652] sm:%s645]
                %655 = vst [vmem:[%s653] sm:%s645] %v654
              $region249: #{decoder_step.1} parent=243 // loop_footer
                %s651 = sadd.s32 1, %s647
              $region250: #{decoder_step.1} parent=243 // loop_footer_branch
                %646 = sbr.rel target = $region246
              $region251: #{decoder_step.1} parent=243 // loop_exit
                _
            $region244: #{decoder_step.1} parent=228 // pred_fallthru
              _
          $region229: #{decoder_step.1} parent=104 // pred_fallthru
            _
          // Predicated region
          $region230: #{decoder_step.1} parent=104 // pred_check
            _
          $region231: #{decoder_step.1} parent=104 // pred_check_branch
            %629 = sbr.rel (0) target = $region233
          $region232: #{decoder_step.1} parent=104 // pred_region
            %s631 = ssub.s32 2, 1
            loop: start=0, step=1, limit=1
            $region234: #{decoder_step.1} parent=232 // loop_pre_header
              _
            $region235: #{decoder_step.1} parent=232 // loop_header
              %s633 = sphi 0, %s637
              %p634 = scmp.ge.s32.totalorder %s633, 1
              %s638 = sphi %s623, %s623
              %s639 = sphi %s624, %s624
            $region236: #{decoder_step.1} parent=232 // loop_header_branch
              %636 = sbr.rel (%p634) target = $region240
            $region237: #{decoder_step.1} parent=232 // loop_body
              %v640 = vld [vmem:[%s638] sm:%s631]
              %641 = vst [vmem:[%s639] sm:%s631] %v640
            $region238: #{decoder_step.1} parent=232 // loop_footer
              %s637 = sadd.s32 1, %s633
            $region239: #{decoder_step.1} parent=232 // loop_footer_branch
              %632 = sbr.rel target = $region235
            $region240: #{decoder_step.1} parent=232 // loop_exit
              _
          $region233: #{decoder_step.1} parent=104 // pred_fallthru
            _
          // Predicated region
          $region252: #{decoder_step.1} parent=104 // pred_check
            _
          $region253: #{decoder_step.1} parent=104 // pred_check_branch
            %658 = sbr.rel (0) target = $region255
          $region254: #{decoder_step.1} parent=104 // pred_region
            %659 = vsyncadd %s625, 16
          $region255: #{decoder_step.1} parent=104 // pred_fallthru
            _
          %s660 = sld [smem:[#allocation6 + $0x5]]
          %s661 = scalar_lea.vmem %s3, %s660
          %s662 = scalar_lea.vmem [#allocation2], 5
          %s663 = scalar_lea.sflag [#allocation4], 5
          // Predicated region
          $region256: #{decoder_step.1} parent=104 // pred_check
            _
          $region257: #{decoder_step.1} parent=104 // pred_check_branch
            %665 = sbr.rel target = $region259
          $region258: #{decoder_step.1} parent=104 // pred_region
            // Predicated region
            $region271: #{decoder_step.1} parent=258 // pred_check
              _
            $region272: #{decoder_step.1} parent=258 // pred_check_branch
              %681 = sbr.rel (0) target = $region274
            $region273: #{decoder_step.1} parent=258 // pred_region
              %s683 = ssub.s32 2, 1
              loop: start=0, step=1, limit=1
              $region275: #{decoder_step.1} parent=273 // loop_pre_header
                _
              $region276: #{decoder_step.1} parent=273 // loop_header
                %s685 = sphi 0, %s689
                %p686 = scmp.ge.s32.totalorder %s685, 1
                %s690 = sphi %s661, %s661
                %s691 = sphi %s662, %s662
              $region277: #{decoder_step.1} parent=273 // loop_header_branch
                %688 = sbr.rel (%p686) target = $region281
              $region278: #{decoder_step.1} parent=273 // loop_body
                %v692 = vld [vmem:[%s690] sm:%s683]
                %693 = vst [vmem:[%s691] sm:%s683] %v692
              $region279: #{decoder_step.1} parent=273 // loop_footer
                %s689 = sadd.s32 1, %s685
              $region280: #{decoder_step.1} parent=273 // loop_footer_branch
                %684 = sbr.rel target = $region276
              $region281: #{decoder_step.1} parent=273 // loop_exit
                _
            $region274: #{decoder_step.1} parent=258 // pred_fallthru
              _
          $region259: #{decoder_step.1} parent=104 // pred_fallthru
            _
          // Predicated region
          $region260: #{decoder_step.1} parent=104 // pred_check
            _
          $region261: #{decoder_step.1} parent=104 // pred_check_branch
            %667 = sbr.rel (0) target = $region263
          $region262: #{decoder_step.1} parent=104 // pred_region
            %s669 = ssub.s32 2, 1
            loop: start=0, step=1, limit=1
            $region264: #{decoder_step.1} parent=262 // loop_pre_header
              _
            $region265: #{decoder_step.1} parent=262 // loop_header
              %s671 = sphi 0, %s675
              %p672 = scmp.ge.s32.totalorder %s671, 1
              %s676 = sphi %s661, %s661
              %s677 = sphi %s662, %s662
            $region266: #{decoder_step.1} parent=262 // loop_header_branch
              %674 = sbr.rel (%p672) target = $region270
            $region267: #{decoder_step.1} parent=262 // loop_body
              %v678 = vld [vmem:[%s676] sm:%s669]
              %679 = vst [vmem:[%s677] sm:%s669] %v678
            $region268: #{decoder_step.1} parent=262 // loop_footer
              %s675 = sadd.s32 1, %s671
            $region269: #{decoder_step.1} parent=262 // loop_footer_branch
              %670 = sbr.rel target = $region265
            $region270: #{decoder_step.1} parent=262 // loop_exit
              _
          $region263: #{decoder_step.1} parent=104 // pred_fallthru
            _
          // Predicated region
          $region282: #{decoder_step.1} parent=104 // pred_check
            _
          $region283: #{decoder_step.1} parent=104 // pred_check_branch
            %696 = sbr.rel (0) target = $region285
          $region284: #{decoder_step.1} parent=104 // pred_region
            %697 = vsyncadd %s663, 16
          $region285: #{decoder_step.1} parent=104 // pred_fallthru
            _
          %s698 = sld [smem:[#allocation6 + $0x6]]
          %s699 = scalar_lea.vmem %s3, %s698
          %s700 = scalar_lea.vmem [#allocation2], 6
          %s701 = scalar_lea.sflag [#allocation4], 6
          // Predicated region
          $region286: #{decoder_step.1} parent=104 // pred_check
            _
          $region287: #{decoder_step.1} parent=104 // pred_check_branch
            %703 = sbr.rel target = $region289
          $region288: #{decoder_step.1} parent=104 // pred_region
            // Predicated region
            $region301: #{decoder_step.1} parent=288 // pred_check
              _
            $region302: #{decoder_step.1} parent=288 // pred_check_branch
              %719 = sbr.rel (0) target = $region304
            $region303: #{decoder_step.1} parent=288 // pred_region
              %s721 = ssub.s32 2, 1
              loop: start=0, step=1, limit=1
              $region305: #{decoder_step.1} parent=303 // loop_pre_header
                _
              $region306: #{decoder_step.1} parent=303 // loop_header
                %s723 = sphi 0, %s727
                %p724 = scmp.ge.s32.totalorder %s723, 1
                %s728 = sphi %s699, %s699
                %s729 = sphi %s700, %s700
              $region307: #{decoder_step.1} parent=303 // loop_header_branch
                %726 = sbr.rel (%p724) target = $region311
              $region308: #{decoder_step.1} parent=303 // loop_body
                %v730 = vld [vmem:[%s728] sm:%s721]
                %731 = vst [vmem:[%s729] sm:%s721] %v730
              $region309: #{decoder_step.1} parent=303 // loop_footer
                %s727 = sadd.s32 1, %s723
              $region310: #{decoder_step.1} parent=303 // loop_footer_branch
                %722 = sbr.rel target = $region306
              $region311: #{decoder_step.1} parent=303 // loop_exit
                _
            $region304: #{decoder_step.1} parent=288 // pred_fallthru
              _
          $region289: #{decoder_step.1} parent=104 // pred_fallthru
            _
          // Predicated region
          $region290: #{decoder_step.1} parent=104 // pred_check
            _
          $region291: #{decoder_step.1} parent=104 // pred_check_branch
            %705 = sbr.rel (0) target = $region293
          $region292: #{decoder_step.1} parent=104 // pred_region
            %s707 = ssub.s32 2, 1
            loop: start=0, step=1, limit=1
            $region294: #{decoder_step.1} parent=292 // loop_pre_header
              _
            $region295: #{decoder_step.1} parent=292 // loop_header
              %s709 = sphi 0, %s713
              %p710 = scmp.ge.s32.totalorder %s709, 1
              %s714 = sphi %s699, %s699
              %s715 = sphi %s700, %s700
            $region296: #{decoder_step.1} parent=292 // loop_header_branch
              %712 = sbr.rel (%p710) target = $region300
            $region297: #{decoder_step.1} parent=292 // loop_body
              %v716 = vld [vmem:[%s714] sm:%s707]
              %717 = vst [vmem:[%s715] sm:%s707] %v716
            $region298: #{decoder_step.1} parent=292 // loop_footer
              %s713 = sadd.s32 1, %s709
            $region299: #{decoder_step.1} parent=292 // loop_footer_branch
              %708 = sbr.rel target = $region295
            $region300: #{decoder_step.1} parent=292 // loop_exit
              _
          $region293: #{decoder_step.1} parent=104 // pred_fallthru
            _
          // Predicated region
          $region312: #{decoder_step.1} parent=104 // pred_check
            _
          $region313: #{decoder_step.1} parent=104 // pred_check_branch
            %734 = sbr.rel (0) target = $region315
          $region314: #{decoder_step.1} parent=104 // pred_region
            %735 = vsyncadd %s701, 16
          $region315: #{decoder_step.1} parent=104 // pred_fallthru
            _
          %s736 = sld [smem:[#allocation6 + $0x7]]
          %s737 = scalar_lea.vmem %s3, %s736
          %s738 = scalar_lea.vmem [#allocation2], 7
          %s739 = scalar_lea.sflag [#allocation4], 7
          // Predicated region
          $region316: #{decoder_step.1} parent=104 // pred_check
            _
          $region317: #{decoder_step.1} parent=104 // pred_check_branch
            %741 = sbr.rel target = $region319
          $region318: #{decoder_step.1} parent=104 // pred_region
            // Predicated region
            $region331: #{decoder_step.1} parent=318 // pred_check
              _
            $region332: #{decoder_step.1} parent=318 // pred_check_branch
              %757 = sbr.rel (0) target = $region334
            $region333: #{decoder_step.1} parent=318 // pred_region
              %s759 = ssub.s32 2, 1
              loop: start=0, step=1, limit=1
              $region335: #{decoder_step.1} parent=333 // loop_pre_header
                _
              $region336: #{decoder_step.1} parent=333 // loop_header
                %s761 = sphi 0, %s765
                %p762 = scmp.ge.s32.totalorder %s761, 1
                %s766 = sphi %s737, %s737
                %s767 = sphi %s738, %s738
              $region337: #{decoder_step.1} parent=333 // loop_header_branch
                %764 = sbr.rel (%p762) target = $region341
              $region338: #{decoder_step.1} parent=333 // loop_body
                %v768 = vld [vmem:[%s766] sm:%s759]
                %769 = vst [vmem:[%s767] sm:%s759] %v768
              $region339: #{decoder_step.1} parent=333 // loop_footer
                %s765 = sadd.s32 1, %s761
              $region340: #{decoder_step.1} parent=333 // loop_footer_branch
                %760 = sbr.rel target = $region336
              $region341: #{decoder_step.1} parent=333 // loop_exit
                _
            $region334: #{decoder_step.1} parent=318 // pred_fallthru
              _
          $region319: #{decoder_step.1} parent=104 // pred_fallthru
            _
          // Predicated region
          $region320: #{decoder_step.1} parent=104 // pred_check
            _
          $region321: #{decoder_step.1} parent=104 // pred_check_branch
            %743 = sbr.rel (0) target = $region323
          $region322: #{decoder_step.1} parent=104 // pred_region
            %s745 = ssub.s32 2, 1
            loop: start=0, step=1, limit=1
            $region324: #{decoder_step.1} parent=322 // loop_pre_header
              _
            $region325: #{decoder_step.1} parent=322 // loop_header
              %s747 = sphi 0, %s751
              %p748 = scmp.ge.s32.totalorder %s747, 1
              %s752 = sphi %s737, %s737
              %s753 = sphi %s738, %s738
            $region326: #{decoder_step.1} parent=322 // loop_header_branch
              %750 = sbr.rel (%p748) target = $region330
            $region327: #{decoder_step.1} parent=322 // loop_body
              %v754 = vld [vmem:[%s752] sm:%s745]
              %755 = vst [vmem:[%s753] sm:%s745] %v754
            $region328: #{decoder_step.1} parent=322 // loop_footer
              %s751 = sadd.s32 1, %s747
            $region329: #{decoder_step.1} parent=322 // loop_footer_branch
              %746 = sbr.rel target = $region325
            $region330: #{decoder_step.1} parent=322 // loop_exit
              _
          $region323: #{decoder_step.1} parent=104 // pred_fallthru
            _
          // Predicated region
          $region342: #{decoder_step.1} parent=104 // pred_check
            _
          $region343: #{decoder_step.1} parent=104 // pred_check_branch
            %772 = sbr.rel (0) target = $region345
          $region344: #{decoder_step.1} parent=104 // pred_region
            %773 = vsyncadd %s739, 16
          $region345: #{decoder_step.1} parent=104 // pred_fallthru
            _
          %s774 = smul.u32 1, 1
          %s775 = sshll.u32 %s774, 4
          %776 = dma.done [#allocation4], %s775
          %s777 = sshll.u32 %s774, 4
          %778 = dma.done %s511, %s777
          %s779 = sshll.u32 %s774, 4
          %780 = dma.done %s549, %s779
          %s781 = sshll.u32 %s774, 4
          %782 = dma.done %s587, %s781
          %s783 = sshll.u32 %s774, 4
          %784 = dma.done %s625, %s783
          %s785 = sshll.u32 %s774, 4
          %786 = dma.done %s663, %s785
          %s787 = sshll.u32 %s774, 4
          %788 = dma.done %s701, %s787
          %s789 = sshll.u32 %s774, 4
          %790 = dma.done %s739, %s789
          %v791 = vld [vmem:[#allocation2] sm:$0xff]
          %v792 = vpack.c.bf16 %v791, %v791
          %v793 = vld [vmem:[#allocation7] sm:$0xff]
          %v794 = vld [vmem:[#allocation10] sm:$0xff]
          %v795 = vld [vmem:[%s4] sm:$0xf]
          %v796 = vld [vmem:[%s4 + $0x4] sm:$0xf]
          %v797 = vld [vmem:[%s4 + $0x8] sm:$0xf]
          %v798 = vld [vmem:[%s4 + $0xc] sm:$0xf]
          %v799 = vld [vmem:[%s4 + $0x10] sm:$0xf]
          %v800 = vld [vmem:[%s4 + $0x14] sm:$0xf]
          %v801 = vld [vmem:[%s4 + $0x18] sm:$0xf]
          %v802 = vld [vmem:[%s4 + $0x1c] sm:$0xf]
          %v803 = vld [vmem:[%s5] sm:$0x1]
          %v804 = vpack.c.bf16 %v793, %v793
          %v809 = vunpack.c.l.b16 %v799
          %v810 = vunpack.c.l.b16 %v800
          %v811 = vunpack.c.l.b16 %v801
          %v812 = vunpack.c.l.b16 %v802
          %v813 = vpack.c.b16 %v810, %v809
          %v814 = vpack.c.b16 %v812, %v811
          %vm817 = vcmask 261120
          %v819 = vsel %vm817, %v804, 0
          %821 = vmatpush.bf16.msra.mxu0 0
          %822 = vmatpush.bf16.msra.mxu0 0
          %823 = vmatpush.bf16.msra.mxu0 0
          %824 = vmatpush.bf16.msra.mxu0 0
          %825 = vmatpush.bf16.msra.mxu0 0
          %826 = vmatpush.bf16.msra.mxu0 0
          %827 = vmatpush.bf16.msra.mxu0 %v814
          %828 = vmatpush.bf16.msra.mxu0 %v813
          %829 = vmatmul.bf16.gmra.mxu0 %v819
          %v830 = vpop.f32.mrf.mxu0
          %v831 = vadd.f32 0.0, %v830
          %v832 = vpop.f32.mrf.mxu0
          %833 = vdwg.mxu0
          %v838 = vunpack.c.l.b16 %v795
          %v839 = vunpack.c.l.b16 %v796
          %v840 = vunpack.c.l.b16 %v797
          %v841 = vunpack.c.l.b16 %v798
          %v842 = vpack.c.b16 %v839, %v838
          %v843 = vpack.c.b16 %v841, %v840
          %v847 = vsel %vm817, %v792, 0
          %849 = vmatpush.bf16.msra.mxu0 0
          %850 = vmatpush.bf16.msra.mxu0 0
          %851 = vmatpush.bf16.msra.mxu0 0
          %852 = vmatpush.bf16.msra.mxu0 0
          %853 = vmatpush.bf16.msra.mxu0 0
          %854 = vmatpush.bf16.msra.mxu0 0
          %855 = vmatpush.bf16.msra.mxu0 %v843
          %856 = vmatpush.bf16.msra.mxu0 %v842
          %857 = vmatmul.bf16.gmra.mxu0 %v847
          %v858 = vpop.f32.mrf.mxu0
          %v859 = vadd.f32 %v831, %v858
          %v860 = vpop.f32.mrf.mxu0
          %861 = vdwg.mxu0
          %v863 = vperm.slane %v803, 0
          %v865 = vadd.f32 %v859, %v863
          %v866 = vxor.u32 %v865, 2147483648
          %v867 = vmul.f32 %v866, 1.442695
          %v868 = vpow.pop %v867
          %v869 = vadd.f32 %v868, 1.0
          %v870 = vrcp.pop %v869
          %v871 = vmul.f32 %v869, %v870
          %v872 = vsub.f32 1.0, %v871
          %v873 = vmul.f32 %v870, %v872
          %v874 = vadd.f32 %v870, %v873
          %vm875 = vweird.f32 %v869
          %vm876 = vweird.f32 %v870
          %vm877 = vmor %vm875, %vm876
          %v878 = vsel %vm877, %v870, %v874
          %v879 = vand.u32 2147483647, %v869
          %vm880 = vcmp.eq.f32.partialorder %v879, 8.507059e+37
          %v881 = vand.u32 %v869, 2147483648
          %v882 = vor.u32 1.1754944e-38, %v881
          %v883 = vsel %vm880, %v882, %v878
          %v884 = vmul.f32 1.0, %v883
          %v885 = vtanh.pop %v865
          %887 = vrot.lane.b32.xlu0 %v794, 32
          %v888 = vpop.permute.xlu0 %887
          %v890 = vmul.f32 %v884, %v888
          %892 = vrot.lane.b32.xlu0 %v885, 64
          %v893 = vpop.permute.xlu0 %892
          %v895 = vmul.f32 %v884, %v893
          %897 = vrot.lane.b32.xlu0 %v895, 32
          %v898 = vpop.permute.xlu0 %897
          %v900 = vadd.f32 %v890, %v898
          %v901 = vtanh.pop %v900
          %903 = vrot.lane.b32.xlu0 %v901, 64
          %v904 = vpop.permute.xlu0 %903
          %v906 = vmul.f32 %v884, %v904
          %908 = vrot.lane.b32.xlu0 %v906, 32
          %v909 = vpop.permute.xlu0 %908
          %911 = vst.msk [vmem:[#allocation14] sm:$0xff] %vm817, %v909
          %913 = vrot.lane.b32.xlu0 %v900, 96
          %v914 = vpop.permute.xlu0 %913
          %916 = vst.msk [vmem:[#allocation16] sm:$0xff] %vm817, %v914
          %v917 = vpack.c.bf16 %v906, %v906
          %s918 = scalar_lea.vmem [#allocation7], 8
          %v919 = vld [vmem:[%s918] sm:$0xff]
          %s920 = scalar_lea.vmem [#allocation10], 8
          %v921 = vld [vmem:[%s920] sm:$0xff]
          %v922 = vld [vmem:[%s6] sm:$0xf]
          %v923 = vld [vmem:[%s6 + $0x4] sm:$0xf]
          %v924 = vld [vmem:[%s6 + $0x8] sm:$0xf]
          %v925 = vld [vmem:[%s6 + $0xc] sm:$0xf]
          %v926 = vld [vmem:[%s6 + $0x10] sm:$0xf]
          %v927 = vld [vmem:[%s6 + $0x14] sm:$0xf]
          %v928 = vld [vmem:[%s6 + $0x18] sm:$0xf]
          %v929 = vld [vmem:[%s6 + $0x1c] sm:$0xf]
          %v930 = vld [vmem:[%s7] sm:$0x1]
          %v931 = vpack.c.bf16 %v919, %v919
          %v936 = vunpack.c.l.b16 %v926
          %v937 = vunpack.c.l.b16 %v927
          %v938 = vunpack.c.l.b16 %v928
          %v939 = vunpack.c.l.b16 %v929
          %v940 = vpack.c.b16 %v937, %v936
          %v941 = vpack.c.b16 %v939, %v938
          %v945 = vsel %vm817, %v931, 0
          %947 = vmatpush.bf16.msra.mxu0 0
          %948 = vmatpush.bf16.msra.mxu0 0
          %949 = vmatpush.bf16.msra.mxu0 0
          %950 = vmatpush.bf16.msra.mxu0 0
          %951 = vmatpush.bf16.msra.mxu0 0
          %952 = vmatpush.bf16.msra.mxu0 0
          %953 = vmatpush.bf16.msra.mxu0 %v941
          %954 = vmatpush.bf16.msra.mxu0 %v940
          %955 = vmatmul.bf16.gmra.mxu0 %v945
          %v956 = vpop.f32.mrf.mxu0
          %v957 = vadd.f32 0.0, %v956
          %v958 = vpop.f32.mrf.mxu0
          %959 = vdwg.mxu0
          %961 = vrot.lane.b32.xlu0 %v917, 32
          %v962 = vpop.permute.xlu0 %961
          %v967 = vunpack.c.l.b16 %v922
          %v968 = vunpack.c.l.b16 %v923
          %v969 = vunpack.c.l.b16 %v924
          %v970 = vunpack.c.l.b16 %v925
          %v971 = vpack.c.b16 %v968, %v967
          %v972 = vpack.c.b16 %v970, %v969
          %v976 = vsel %vm817, %v962, 0
          %978 = vmatpush.bf16.msra.mxu0 0
          %979 = vmatpush.bf16.msra.mxu0 0
          %980 = vmatpush.bf16.msra.mxu0 0
          %981 = vmatpush.bf16.msra.mxu0 0
          %982 = vmatpush.bf16.msra.mxu0 0
          %983 = vmatpush.bf16.msra.mxu0 0
          %984 = vmatpush.bf16.msra.mxu0 %v972
          %985 = vmatpush.bf16.msra.mxu0 %v971
          %986 = vmatmul.bf16.gmra.mxu0 %v976
          %v987 = vpop.f32.mrf.mxu0
          %v988 = vadd.f32 %v957, %v987
          %v989 = vpop.f32.mrf.mxu0
          %990 = vdwg.mxu0
          %v992 = vperm.slane %v930, 0
          %v994 = vadd.f32 %v988, %v992
          %v995 = vxor.u32 %v994, 2147483648
          %v996 = vmul.f32 %v995, 1.442695
          %v997 = vpow.pop %v996
          %v998 = vadd.f32 %v997, 1.0
          %v999 = vrcp.pop %v998
          %v1000 = vmul.f32 %v998, %v999
          %v1001 = vsub.f32 1.0, %v1000
          %v1002 = vmul.f32 %v999, %v1001
          %v1003 = vadd.f32 %v999, %v1002
          %vm1004 = vweird.f32 %v998
          %vm1005 = vweird.f32 %v999
          %vm1006 = vmor %vm1004, %vm1005
          %v1007 = vsel %vm1006, %v999, %v1003
          %v1008 = vand.u32 2147483647, %v998
          %vm1009 = vcmp.eq.f32.partialorder %v1008, 8.507059e+37
          %v1010 = vand.u32 %v998, 2147483648
          %v1011 = vor.u32 1.1754944e-38, %v1010
          %v1012 = vsel %vm1009, %v1011, %v1007
          %v1013 = vmul.f32 1.0, %v1012
          %v1014 = vtanh.pop %v994
          %1016 = vrot.lane.b32.xlu0 %v921, 32
          %v1017 = vpop.permute.xlu0 %1016
          %v1019 = vmul.f32 %v1013, %v1017
          %1021 = vrot.lane.b32.xlu0 %v1014, 64
          %v1022 = vpop.permute.xlu0 %1021
          %v1024 = vmul.f32 %v1013, %v1022
          %1026 = vrot.lane.b32.xlu0 %v1024, 32
          %v1027 = vpop.permute.xlu0 %1026
          %v1029 = vadd.f32 %v1019, %v1027
          %v1030 = vtanh.pop %v1029
          %1032 = vrot.lane.b32.xlu0 %v1030, 64
          %v1033 = vpop.permute.xlu0 %1032
          %v1035 = vmul.f32 %v1013, %v1033
          %1037 = vrot.lane.b32.xlu0 %v1035, 32
          %v1038 = vpop.permute.xlu0 %1037
          %s1040 = scalar_lea.vmem [#allocation14], 8
          %1041 = vst.msk [vmem:[%s1040] sm:$0xff] %vm817, %v1038
          %1043 = vrot.lane.b32.xlu0 %v1029, 96
          %v1044 = vpop.permute.xlu0 %1043
          %s1046 = scalar_lea.vmem [#allocation16], 8
          %1047 = vst.msk [vmem:[%s1046] sm:$0xff] %vm817, %v1044
          %v1048 = vpack.c.bf16 %v1035, %v1035
          %1050 = vrot.lane.b32.xlu0 %v1048, 32
          %v1051 = vpop.permute.xlu0 %1050
          %vm1053 = vcmask 257024
          %1054 = vst.msk [vmem:[#allocation3] sm:$0xf] %vm1053, %v1051
        $region105: #{decoder_step.1} parent=88 // pred_fallthru
          _
        %v1055 = vld [vmem:[#allocation3] sm:$0xf]
        %v1056 = vld [vmem:[%s426] sm:$0xf]
        %v1057 = vld [vmem:[%s426 + $0x4] sm:$0xf]
        %v1058 = vld [vmem:[%s426 + $0x8] sm:$0xf]
        %v1059 = vld [vmem:[%s426 + $0xc] sm:$0xf]
        %v1060 = vld [vmem:[%s466] sm:$0x1]
        %v1062 = vperm.slane %v1060, 0
        %v1068 = vunpack.c.l.b16 %v1056
        %v1069 = vunpack.c.l.b16 %v1057
        %v1070 = vunpack.c.l.b16 %v1058
        %v1071 = vunpack.c.l.b16 %v1059
        %v1072 = vpack.c.b16 %v1069, %v1068
        %v1073 = vpack.c.b16 %v1071, %v1070
        %vm1076 = vcmask 261120
        %v1078 = vsel %vm1076, %v1055, 0
        %1080 = vmatpush.bf16.msra.mxu0 0
        %1081 = vmatpush.bf16.msra.mxu0 0
        %1082 = vmatpush.bf16.msra.mxu0 0
        %1083 = vmatpush.bf16.msra.mxu0 0
        %1084 = vmatpush.bf16.msra.mxu0 0
        %1085 = vmatpush.bf16.msra.mxu0 0
        %1086 = vmatpush.bf16.msra.mxu0 %v1073
        %1087 = vmatpush.bf16.msra.mxu0 %v1072
        %1088 = vmatmul.bf16.gmra.mxu0 %v1078
        %v1089 = vpop.f32.mrf.mxu0
        %v1090 = vadd.f32 %v1062, %v1089
        %v1091 = vpop.f32.mrf.mxu0
        %1092 = vdwg.mxu0
        %1093 = vst [vmem:[%s459] sm:$0xff] %v1090
        %s1094 = sand.u32 %s224, 1
        %s1095 = scalar_lea.sflag [#allocation9], %s1094
        %s1096 = sand.u32 %s224, 1
        %s1097 = smul.addr %s1096, 8
        %s1098 = scalar_lea.vmem [#allocation13], %s1097
        // Predicated region
        $region346: #{decoder_step.1} parent=88 // pred_check
          %p1099 = pneg %p234
        $region347: #{decoder_step.1} parent=88 // pred_check_branch
          %1101 = sbr.rel (%p1099) target = $region349
        $region348: #{decoder_step.1} parent=88 // pred_region
          %1103 = vsyncadd %s1095, 0
          %s1104 = smul.addr %s38, 8
          %s1105 = scalar_lea.hbm %s10, %s1104
          %s1107 = sshll.u32 %s1098, 4
          %s1108 = int_to_ptr.vmem [resolvable:$true] %s1107
          %s1109 = sshll.u32 %s1105, 4
          %s1110 = int_to_ptr.hbm [resolvable:$true] %s1109
          %1112 = dma.vmem_to_hbm [thread:$0]  %s1108, 128, %s1110, %s1095
        $region349: #{decoder_step.1} parent=88 // pred_fallthru
          _
        // Predicated region
        $region350: #{decoder_step.1} parent=88 // pred_check
          %p1113 = pneg %p255
        $region351: #{decoder_step.1} parent=88 // pred_check_branch
          %1115 = sbr.rel (%p1113) target = $region353
        $region352: #{decoder_step.1} parent=88 // pred_region
          %1117 = vsyncadd [#allocation15], 0
          %s1118 = sshll.u32 [#allocation14], 4
          %s1119 = int_to_ptr.vmem [resolvable:$true] %s1118
          %s1120 = sshll.u32 %s11, 4
          %s1121 = int_to_ptr.hbm [resolvable:$true] %s1120
          %1126 = dma.vmem_to_hbm [thread:$0]  %s1119, 256, %s1121, [#allocation15], 128, 128, 8
        $region353: #{decoder_step.1} parent=88 // pred_fallthru
          _
        // Predicated region
        $region354: #{decoder_step.1} parent=88 // pred_check
          %p1127 = pneg %p276
        $region355: #{decoder_step.1} parent=88 // pred_check_branch
          %1129 = sbr.rel (%p1127) target = $region357
        $region356: #{decoder_step.1} parent=88 // pred_region
          %1131 = vsyncadd [#allocation15], 0
          %s1132 = sshll.u32 [#allocation16], 4
          %s1133 = int_to_ptr.vmem [resolvable:$true] %s1132
          %s1134 = sshll.u32 %s12, 4
          %s1135 = int_to_ptr.hbm [resolvable:$true] %s1134
          %1140 = dma.vmem_to_hbm [thread:$0]  %s1133, 256, %s1135, [#allocation15], 128, 128, 8
        $region357: #{decoder_step.1} parent=88 // pred_fallthru
          _
        // Predicated region
        $region358: #{decoder_step.1} parent=88 // pred_check
          %p1141 = pneg %p255
        $region359: #{decoder_step.1} parent=88 // pred_check_branch
          %1143 = sbr.rel (%p1141) target = $region361
        $region360: #{decoder_step.1} parent=88 // pred_region
          %1145 = dma.done [#allocation15], 256
        $region361: #{decoder_step.1} parent=88 // pred_fallthru
          _
        // Predicated region
        $region362: #{decoder_step.1} parent=88 // pred_check
          %p1146 = pneg %p276
        $region363: #{decoder_step.1} parent=88 // pred_check_branch
          %1148 = sbr.rel (%p1146) target = $region365
        $region364: #{decoder_step.1} parent=88 // pred_region
          %1150 = dma.done [#allocation15], 256
        $region365: #{decoder_step.1} parent=88 // pred_fallthru
          _
      $region89: #{decoder_step.1} parent=5 // pred_fallthru
        _
      %p1151 = scmp.le.s32.totalorder 2, %s33
      // Predicated region
      $region366: #{decoder_step.1} parent=5 // pred_check
        %p1152 = pneg %p1151
      $region367: #{decoder_step.1} parent=5 // pred_check_branch
        %1154 = sbr.rel (%p1152) target = $region369
      $region368: #{decoder_step.1} parent=5 // pred_region
        %s1155 = ssub.s32 %s33, 2
        // Predicated region
        $region370: #{decoder_step.1} parent=368 // pred_check
          %p1156 = pneg %p240
        $region371: #{decoder_step.1} parent=368 // pred_check_branch
          %1158 = sbr.rel (%p1156) target = $region373
        $region372: #{decoder_step.1} parent=368 // pred_region
          %s1159 = sand.u32 %s225, 1
          %s1160 = scalar_lea.sflag [#allocation9], %s1159
          %s1161 = sand.u32 %s225, 1
          %s1162 = smul.addr %s1161, 8
          %s1163 = scalar_lea.vmem [#allocation13], %s1162
          %1165 = dma.done %s1160, 128
        $region373: #{decoder_step.1} parent=368 // pred_fallthru
          _
      $region369: #{decoder_step.1} parent=5 // pred_fallthru
        _
    $region6: #{decoder_step.1} parent=1 // loop_footer
      %s37 = sadd.s32 1, %s33
    $region7: #{decoder_step.1} parent=1 // loop_footer_branch
      %32 = sbr.rel target = $region3
    $region8: #{decoder_step.1} parent=1 // loop_exit
      _
    %1166 = vsyncpa [#allocation8], 1
    %s1167 = scalar_lea.sflag [#allocation8], 1
    %1168 = vsyncpa %s1167, 1
    %1169 = vsyncpa [#allocation11], 1
    %1170 = vsyncpa [#allocation9], 1
    %s1171 = scalar_lea.sflag [#allocation9], 1
    %1172 = vsyncpa %s1171, 1
    %1173 = vsyncpa [#allocation15], 1
  %1174 = vsyncmov [#allocation4]
  %s1175 = vpop.sfrf %1174
  %p1176 = scmp.eq.s32.totalorder %s1175, 0
  %p1177 = pneg %p1176
  %1179 = shalt.err (%p1177)
  %s1180 = scalar_lea.sflag [#allocation4], 1
  %1181 = vsyncmov %s1180
  %s1182 = vpop.sfrf %1181
  %p1183 = scmp.eq.s32.totalorder %s1182, 0
  %p1184 = pneg %p1183
  %1186 = shalt.err (%p1184)
  %s1187 = scalar_lea.sflag [#allocation4], 2
  %1188 = vsyncmov %s1187
  %s1189 = vpop.sfrf %1188
  %p1190 = scmp.eq.s32.totalorder %s1189, 0
  %p1191 = pneg %p1190
  %1193 = shalt.err (%p1191)
  %s1194 = scalar_lea.sflag [#allocation4], 3
  %1195 = vsyncmov %s1194
  %s1196 = vpop.sfrf %1195
  %p1197 = scmp.eq.s32.totalorder %s1196, 0
  %p1198 = pneg %p1197
  %1200 = shalt.err (%p1198)
  %s1201 = scalar_lea.sflag [#allocation4], 4
  %1202 = vsyncmov %s1201
  %s1203 = vpop.sfrf %1202
  %p1204 = scmp.eq.s32.totalorder %s1203, 0
  %p1205 = pneg %p1204
  %1207 = shalt.err (%p1205)
  %s1208 = scalar_lea.sflag [#allocation4], 5
  %1209 = vsyncmov %s1208
  %s1210 = vpop.sfrf %1209
  %p1211 = scmp.eq.s32.totalorder %s1210, 0
  %p1212 = pneg %p1211
  %1214 = shalt.err (%p1212)
  %s1215 = scalar_lea.sflag [#allocation4], 6
  %1216 = vsyncmov %s1215
  %s1217 = vpop.sfrf %1216
  %p1218 = scmp.eq.s32.totalorder %s1217, 0
  %p1219 = pneg %p1218
  %1221 = shalt.err (%p1219)
  %s1222 = scalar_lea.sflag [#allocation4], 7
  %1223 = vsyncmov %s1222
  %s1224 = vpop.sfrf %1223
  %p1225 = scmp.eq.s32.totalorder %s1224, 0
  %p1226 = pneg %p1225
  %1228 = shalt.err (%p1226)

</llo_original>
